<compile_context>
chip_gen: v7x
topology: tpu7x:2x2x1
jax: 0.10.0
libtpu: 0.0.40
codegen_flags: <defaults>
</compile_context>

<pallas_src>
import functools

import jax
import jax.numpy as jnp
from jax.experimental import pallas as pl
from jax.experimental.pallas import tpu as pltpu


# -----------------------------------------------------------------------------
# Fused Pallas kernel: entire autoencoder forward
# -----------------------------------------------------------------------------
def _fused_forward_kernel(
    x_ref, adj_ref,
    w1_ref, as1_ref, ad1_ref, b1_ref, sel1_ref, selt1_ref,
    w2_ref, as2_ref, ad2_ref, b2_ref, sel2_ref, selt2_ref,
    w3_ref, as3_ref, ad3_ref, b3_ref, sel3_ref, selt3_ref,
    w4_ref, as4_ref, ad4_ref, b4_ref, sel4_ref, selt4_ref,
    w5_ref, b5_ref,
    recon_ref, z_ref,
    *, heads_enc):
  """GATLinkAutoencoder forward; everything VMEM-resident, single invocation."""
  x = x_ref[...]                      # [N, in_dim] f32
  adj = adj_ref[...]                  # [N, N] f32, adj[i, j] = 1 iff edge j -> i
  n = x.shape[0]

  # Additive adjacency mask, computed ONCE and reused by all four GAT layers:
  # 0 on edges / self-loops, -1e30 elsewhere (applied after LeakyReLU(0.2),
  # matching PyG GATConv's masked softmax over neighbors).
  adj_bias = (adj - 1.0) * jnp.float32(1e30)                     # [N, N]

  def gat_layer(xin, w_ref, asrc_ref, adst_ref, bias_ref, sel_ref, selt_ref,
                heads, out_slope):
    """Dense-adjacency GATConv.

    xin:   [N, Din]
    w:     [Din, H*F]    heads concatenated on output columns
    a_src: [1, H*F]      per-head attention vectors, concatenated
    a_dst: [1, H*F]
    bias:  [1, H*F]
    sel:   [H*F, H]      column-block selector (sel[k, h] = 1 iff col k in head h)
    sel_t: [H, H*F]
    -> [N, H*F]
    """
    w = w_ref[...]
    a_src = asrc_ref[...]
    a_dst = adst_ref[...]
    bias = bias_ref[...]
    hf = w.shape[1]
    f = hf // heads

    # Linear projection for all heads in one MXU matmul.
    h = jnp.dot(xin, w, preferred_element_type=jnp.float32)      # [N, H*F]

    # Compact per-head attention scores (selector matmul / lane reduction) —
    # no [H, N, H*F] masked copies of h.
    if heads == 1:
      e_dst = jnp.sum(h * a_dst, axis=-1, keepdims=True)         # [N, 1]
      e_src = jnp.sum(h * a_src, axis=-1, keepdims=True)         # [N, 1]
    else:
      sel = sel_ref[...]                                         # [H*F, H]
      e_dst = jnp.dot(h * a_dst, sel, preferred_element_type=jnp.float32)  # [N, H]
      e_src = jnp.dot(h * a_src, sel, preferred_element_type=jnp.float32)  # [N, H]
    e_src_t = e_src.T                                            # [H, N]

    # Per-head softmax blocks built by broadcasting columns of the [N,H] score
    # tiles; each block gets its own row-max (exact match to reference softmax).
    p_blocks = []
    denom_blocks = []
    for hd in range(heads):
      lb = e_dst[:, hd:hd + 1] + e_src_t[hd:hd + 1, :]           # [N, N]
      lb = jnp.where(lb >= 0, lb, 0.2 * lb)                      # LeakyReLU(0.2)
      lb = lb + adj_bias                                         # hoisted additive mask
      m = jnp.max(lb, axis=-1, keepdims=True)
      pb = jnp.exp(lb - m)                                       # masked entries -> 0
      p_blocks.append(pb)
      denom_blocks.append(jnp.sum(pb, axis=-1, keepdims=True))   # [N, 1]

    if heads == 1:
      p_cat = p_blocks[0]                                        # [N, N]
      h_stacked = h                                              # [N, F]
      denom_cat = denom_blocks[0]                                # [N, 1] (broadcasts)
    else:
      sel_t = selt_ref[...]                                      # [H, H*F]
      # Lane-concatenated softmax weights and sublane-stacked, block-masked h:
      # ONE fused aggregation matmul with K = H*N instead of H tiny K=N matmuls.
      p_cat = jnp.concatenate(p_blocks, axis=1)                  # [N, H*N]
      h_stacked = jnp.concatenate(
          [h * sel_t[hd:hd + 1, :] for hd in range(heads)], axis=0)  # [H*N, H*F]
      denom_cat = jnp.concatenate(
          [jnp.broadcast_to(denom_blocks[hd], (n, f)) for hd in range(heads)],
          axis=1)                                                # [N, H*F]

    agg = jnp.dot(p_cat, h_stacked, preferred_element_type=jnp.float32)  # [N, H*F]
    out = agg / denom_cat + bias                                 # deferred, exact normalize
    if out_slope is not None:                                    # fused LeakyReLU(0.01)
      out = jnp.where(out >= 0, out, out_slope * out)
    return out

  x1 = gat_layer(x,  w1_ref, as1_ref, ad1_ref, b1_ref, sel1_ref, selt1_ref, heads_enc, 0.01)
  x2 = gat_layer(x1, w2_ref, as2_ref, ad2_ref, b2_ref, sel2_ref, selt2_ref, heads_enc, 0.01)
  z  = gat_layer(x2, w3_ref, as3_ref, ad3_ref, b3_ref, sel3_ref, selt3_ref, 1, None)
  xr = gat_layer(z,  w4_ref, as4_ref, ad4_ref, b4_ref, sel4_ref, selt4_ref, 1, 0.01)

  # decoder2 (nn.Linear) + residual add, fused into the same kernel.
  rec = jnp.dot(xr, w5_ref[...], preferred_element_type=jnp.float32) + b5_ref[...] + x

  # Single full stores per output.
  # TODO(synk): at real sizes, batch graphs along rows / pack outputs so the last
  # dim is a multiple of 128 (lane-dense stores); not applicable at this toy shape.
  recon_ref[...] = rec
  z_ref[...] = z


# -----------------------------------------------------------------------------
# pallas_call wrapper
# -----------------------------------------------------------------------------
def gat_link_autoencoder_forward(params, x, adj, *, num_heads):
  """Entire forward pass in one fused pallas_call. Returns (reconstructed, z)."""
  n, in_dim = x.shape
  latent_dim = params["latent"][0].shape[1]

  inputs = ((x, adj)
            + tuple(params["encoder1"])
            + tuple(params["encoder2"])
            + tuple(params["latent"])
            + tuple(params["decoder1"])
            + (params["decoder2_w"], params["decoder2_b"]))

  kernel = functools.partial(_fused_forward_kernel, heads_enc=num_heads)

  # No grid: single invocation, whole arrays resident in VMEM (no double-buffered
  # pipeline / per-step overhead for a 1-step grid).
  # TODO(synk): for large N, switch to a row-tiled grid over target-node blocks with
  # online softmax over source blocks, dimension_semantics=("parallel",), and bf16
  # matmul operands so the [N,N] softmax fits v7x's 64 MiB VMEM.
  recon, z = pl.pallas_call(
      kernel,
      out_shape=(jax.ShapeDtypeStruct((n, in_dim), jnp.float32),
                 jax.ShapeDtypeStruct((n, latent_dim), jnp.float32)),
      in_specs=[pl.BlockSpec(memory_space=pltpu.MemorySpace.VMEM) for _ in inputs],
      out_specs=(pl.BlockSpec(memory_space=pltpu.MemorySpace.VMEM),
                 pl.BlockSpec(memory_space=pltpu.MemorySpace.VMEM)),
      compiler_params=pltpu.CompilerParams(vmem_limit_bytes=32 * 1024 * 1024),
  )(*inputs)
  return recon, z


# -----------------------------------------------------------------------------
# Parameter init + helpers
# -----------------------------------------------------------------------------
def _head_selectors(heads, out_per_head):
  """sel [H*F, H] (1 where column k belongs to head h) and its transpose."""
  hf = heads * out_per_head
  head_id = jnp.arange(hf, dtype=jnp.int32) // out_per_head
  sel = (head_id[:, None] == jnp.arange(heads, dtype=jnp.int32)[None, :])
  sel = sel.astype(jnp.float32)                 # [H*F, H]
  return sel, sel.T                             # ([H*F, H], [H, H*F])


def init_gat_params(key, in_dim, out_per_head, heads):
  out_dim = heads * out_per_head
  k_w, k_s, k_d = jax.random.split(key, 3)
  w = jax.random.normal(k_w, (in_dim, out_dim), jnp.float32) * 0.1
  a_src = jax.random.normal(k_s, (1, out_dim), jnp.float32) * 0.1   # per-head, concatenated
  a_dst = jax.random.normal(k_d, (1, out_dim), jnp.float32) * 0.1
  bias = jnp.zeros((1, out_dim), jnp.float32)
  sel, sel_t = _head_selectors(heads, out_per_head)
  return (w, a_src, a_dst, bias, sel, sel_t)


def init_model_params(key, in_dim, hidden_dim, latent_dim, num_heads):
  keys = jax.random.split(key, 6)
  return {
      "encoder1": init_gat_params(keys[0], in_dim, hidden_dim, num_heads),
      "encoder2": init_gat_params(keys[1], hidden_dim * num_heads, hidden_dim, num_heads),
      "latent":   init_gat_params(keys[2], hidden_dim * num_heads, latent_dim, 1),
      "decoder1": init_gat_params(keys[3], latent_dim, hidden_dim, 1),
      # nn.Linear(hidden_dim, in_dim): stored as [hidden_dim, in_dim] so y = x @ W + b
      "decoder2_w": jax.random.normal(keys[4], (hidden_dim, in_dim), jnp.float32) * 0.1,
      "decoder2_b": jax.random.normal(keys[5], (1, in_dim), jnp.float32) * 0.1,
  }


def edge_index_to_adj(edge_index, num_nodes):
  """Dense adjacency adj[dst, src] = 1, with self loops (GATConv default). Binary mask."""
  src, dst = edge_index
  adj = jnp.zeros((num_nodes, num_nodes), jnp.float32)
  adj = adj.at[dst, src].set(1.0)
  adj = adj.at[jnp.arange(num_nodes), jnp.arange(num_nodes)].set(1.0)
  return adj


# -----------------------------------------------------------------------------
# Main
# -----------------------------------------------------------------------------
if __name__ == "__main__":
  N = 16            # number of graph nodes
  in_dim = 8
  hidden_dim = 8
  latent_dim = 4
  num_heads = 4

  key = jax.random.PRNGKey(0)
  k_x, k_p = jax.random.split(key)

  # Node features.
  x = jax.random.normal(k_x, (N, in_dim), jnp.float32)

  # Small deterministic bidirectional ring graph: edge_index [2, E].
  src = jnp.concatenate([jnp.arange(N), (jnp.arange(N) + 1) % N])
  dst = jnp.concatenate([(jnp.arange(N) + 1) % N, jnp.arange(N)])
  edge_index = jnp.stack([src, dst], axis=0)
  adj = edge_index_to_adj(edge_index, N)

  params = init_model_params(k_p, in_dim, hidden_dim, latent_dim, num_heads)

  fwd = jax.jit(functools.partial(gat_link_autoencoder_forward, num_heads=num_heads))
  reconstructed, z = fwd(params, x, adj)
  jax.block_until_ready((reconstructed, z))

  assert reconstructed.shape == (N, in_dim)
  assert z.shape == (N, latent_dim)
  assert bool(jnp.all(jnp.isfinite(reconstructed)))
  assert bool(jnp.all(jnp.isfinite(z)))

  # TODO(synk): nn.Dropout(p=0.5) and GATConv attention dropout are training-only; this forward is eval-mode (identity).
  print("KERNEL_OK")
</pallas_src>

<mosaic_0001>
module attributes {stable_mosaic.version = 11 : i64} {
  func.func @_fused_forward_kernel(%arg0: memref<16x8xf32, #tpu.memory_space<vmem>>, %arg1: memref<16x16xf32, #tpu.memory_space<vmem>>, %arg2: memref<8x32xf32, #tpu.memory_space<vmem>>, %arg3: memref<1x32xf32, #tpu.memory_space<vmem>>, %arg4: memref<1x32xf32, #tpu.memory_space<vmem>>, %arg5: memref<1x32xf32, #tpu.memory_space<vmem>>, %arg6: memref<32x4xf32, #tpu.memory_space<vmem>>, %arg7: memref<4x32xf32, #tpu.memory_space<vmem>>, %arg8: memref<32x32xf32, #tpu.memory_space<vmem>>, %arg9: memref<1x32xf32, #tpu.memory_space<vmem>>, %arg10: memref<1x32xf32, #tpu.memory_space<vmem>>, %arg11: memref<1x32xf32, #tpu.memory_space<vmem>>, %arg12: memref<32x4xf32, #tpu.memory_space<vmem>>, %arg13: memref<4x32xf32, #tpu.memory_space<vmem>>, %arg14: memref<32x4xf32, #tpu.memory_space<vmem>>, %arg15: memref<1x4xf32, #tpu.memory_space<vmem>>, %arg16: memref<1x4xf32, #tpu.memory_space<vmem>>, %arg17: memref<1x4xf32, #tpu.memory_space<vmem>>, %arg18: memref<4x1xf32, #tpu.memory_space<vmem>>, %arg19: memref<1x4xf32, #tpu.memory_space<vmem>>, %arg20: memref<4x8xf32, #tpu.memory_space<vmem>>, %arg21: memref<1x8xf32, #tpu.memory_space<vmem>>, %arg22: memref<1x8xf32, #tpu.memory_space<vmem>>, %arg23: memref<1x8xf32, #tpu.memory_space<vmem>>, %arg24: memref<8x1xf32, #tpu.memory_space<vmem>>, %arg25: memref<1x8xf32, #tpu.memory_space<vmem>>, %arg26: memref<8x8xf32, #tpu.memory_space<vmem>>, %arg27: memref<1x8xf32, #tpu.memory_space<vmem>>, %arg28: memref<16x8xf32, #tpu.memory_space<vmem>>, %arg29: memref<16x4xf32, #tpu.memory_space<vmem>>) attributes {dimension_semantics = [], scalar_prefetch = 0 : i64, scratch_operands = 0 : i64, tpu.core_type = #tpu.core_type<tc>} {
    %c0 = arith.constant 0 : index
    %c0_0 = arith.constant 0 : index
    %0 = vector.load %arg0[%c0, %c0_0] : memref<16x8xf32, #tpu.memory_space<vmem>>, vector<16x8xf32>
    %c0_1 = arith.constant 0 : index
    %c0_2 = arith.constant 0 : index
    %1 = vector.load %arg1[%c0_1, %c0_2] : memref<16x16xf32, #tpu.memory_space<vmem>>, vector<16x16xf32>
    %cst = arith.constant 1.000000e+00 : f32
    %2 = vector.broadcast %cst : f32 to vector<16x16xf32>
    %3 = arith.subf %1, %2 : vector<16x16xf32>
    %cst_3 = arith.constant 1.000000e+30 : f32
    %4 = vector.broadcast %cst_3 : f32 to vector<16x16xf32>
    %5 = arith.mulf %3, %4 : vector<16x16xf32>
    %c0_4 = arith.constant 0 : index
    %c0_5 = arith.constant 0 : index
    %6 = vector.load %arg2[%c0_4, %c0_5] : memref<8x32xf32, #tpu.memory_space<vmem>>, vector<8x32xf32>
    %c0_6 = arith.constant 0 : index
    %c0_7 = arith.constant 0 : index
    %7 = vector.load %arg3[%c0_6, %c0_7] : memref<1x32xf32, #tpu.memory_space<vmem>>, vector<1x32xf32>
    %c0_8 = arith.constant 0 : index
    %c0_9 = arith.constant 0 : index
    %8 = vector.load %arg4[%c0_8, %c0_9] : memref<1x32xf32, #tpu.memory_space<vmem>>, vector<1x32xf32>
    %c0_10 = arith.constant 0 : index
    %c0_11 = arith.constant 0 : index
    %9 = vector.load %arg5[%c0_10, %c0_11] : memref<1x32xf32, #tpu.memory_space<vmem>>, vector<1x32xf32>
    %cst_12 = arith.constant dense<0.000000e+00> : vector<16x32xf32>
    %10 = tpu.matmul %0, %6, %cst_12 {dimension_numbers = #tpu.dot_dimension_numbers<[1], [0], [0], [1], [0, 0, 1, 1], [], []>} : vector<16x8xf32>, vector<8x32xf32>, vector<16x32xf32> -> vector<16x32xf32>
    %c0_13 = arith.constant 0 : index
    %c0_14 = arith.constant 0 : index
    %11 = vector.load %arg6[%c0_13, %c0_14] : memref<32x4xf32, #tpu.memory_space<vmem>>, vector<32x4xf32>
    %12 = vector.broadcast %8 : vector<1x32xf32> to vector<16x32xf32>
    %13 = arith.mulf %10, %12 : vector<16x32xf32>
    %cst_15 = arith.constant dense<0.000000e+00> : vector<16x4xf32>
    %14 = tpu.matmul %13, %11, %cst_15 {dimension_numbers = #tpu.dot_dimension_numbers<[1], [0], [0], [1], [0, 0, 1, 1], [], []>} : vector<16x32xf32>, vector<32x4xf32>, vector<16x4xf32> -> vector<16x4xf32>
    %15 = vector.broadcast %7 : vector<1x32xf32> to vector<16x32xf32>
    %16 = arith.mulf %10, %15 : vector<16x32xf32>
    %cst_16 = arith.constant dense<0.000000e+00> : vector<16x4xf32>
    %17 = tpu.matmul %16, %11, %cst_16 {dimension_numbers = #tpu.dot_dimension_numbers<[1], [0], [0], [1], [0, 0, 1, 1], [], []>} : vector<16x32xf32>, vector<32x4xf32>, vector<16x4xf32> -> vector<16x4xf32>
    %18 = tpu.transpose %17, [1, 0] : vector<16x4xf32> -> vector<4x16xf32>
    %19 = vector.extract_strided_slice %14 {offsets = [0, 0], sizes = [16, 1], strides = [1, 1]} : vector<16x4xf32> to vector<16x1xf32>
    %20 = vector.extract_strided_slice %18 {offsets = [0, 0], sizes = [1, 16], strides = [1, 1]} : vector<4x16xf32> to vector<1x16xf32>
    %21 = vector.broadcast %19 : vector<16x1xf32> to vector<16x16xf32>
    %22 = vector.broadcast %20 : vector<1x16xf32> to vector<16x16xf32>
    %23 = arith.addf %21, %22 : vector<16x16xf32>
    %cst_17 = arith.constant 0.000000e+00 : f32
    %24 = vector.broadcast %cst_17 : f32 to vector<16x16xf32>
    %25 = arith.cmpf oge, %23, %24 : vector<16x16xf32>
    %cst_18 = arith.constant 2.000000e-01 : f32
    %26 = vector.broadcast %cst_18 : f32 to vector<16x16xf32>
    %27 = arith.mulf %26, %23 : vector<16x16xf32>
    %28 = arith.select %25, %23, %27 : vector<16x16xi1>, vector<16x16xf32>
    %29 = arith.addf %28, %5 : vector<16x16xf32>
    %cst_19 = arith.constant dense<0xFF800000> : vector<16xf32>
    %30 = vector.multi_reduction <maximumf>, %29, %cst_19 [1] : vector<16x16xf32> to vector<16xf32>
    %31 = vector.shape_cast %30 : vector<16xf32> to vector<16x1xf32>
    %32 = vector.broadcast %31 : vector<16x1xf32> to vector<16x16xf32>
    %33 = arith.subf %29, %32 : vector<16x16xf32>
    %34 = math.exp %33 : vector<16x16xf32>
    %cst_20 = arith.constant dense<0.000000e+00> : vector<16xf32>
    %35 = vector.multi_reduction <add>, %34, %cst_20 [1] : vector<16x16xf32> to vector<16xf32>
    %36 = vector.shape_cast %35 : vector<16xf32> to vector<16x1xf32>
    %37 = vector.extract_strided_slice %14 {offsets = [0, 1], sizes = [16, 1], strides = [1, 1]} : vector<16x4xf32> to vector<16x1xf32>
    %38 = vector.extract_strided_slice %18 {offsets = [1, 0], sizes = [1, 16], strides = [1, 1]} : vector<4x16xf32> to vector<1x16xf32>
    %39 = vector.broadcast %37 : vector<16x1xf32> to vector<16x16xf32>
    %40 = vector.broadcast %38 : vector<1x16xf32> to vector<16x16xf32>
    %41 = arith.addf %39, %40 : vector<16x16xf32>
    %cst_21 = arith.constant 0.000000e+00 : f32
    %42 = vector.broadcast %cst_21 : f32 to vector<16x16xf32>
    %43 = arith.cmpf oge, %41, %42 : vector<16x16xf32>
    %cst_22 = arith.constant 2.000000e-01 : f32
    %44 = vector.broadcast %cst_22 : f32 to vector<16x16xf32>
    %45 = arith.mulf %44, %41 : vector<16x16xf32>
    %46 = arith.select %43, %41, %45 : vector<16x16xi1>, vector<16x16xf32>
    %47 = arith.addf %46, %5 : vector<16x16xf32>
    %cst_23 = arith.constant dense<0xFF800000> : vector<16xf32>
    %48 = vector.multi_reduction <maximumf>, %47, %cst_23 [1] : vector<16x16xf32> to vector<16xf32>
    %49 = vector.shape_cast %48 : vector<16xf32> to vector<16x1xf32>
    %50 = vector.broadcast %49 : vector<16x1xf32> to vector<16x16xf32>
    %51 = arith.subf %47, %50 : vector<16x16xf32>
    %52 = math.exp %51 : vector<16x16xf32>
    %cst_24 = arith.constant dense<0.000000e+00> : vector<16xf32>
    %53 = vector.multi_reduction <add>, %52, %cst_24 [1] : vector<16x16xf32> to vector<16xf32>
    %54 = vector.shape_cast %53 : vector<16xf32> to vector<16x1xf32>
    %55 = vector.extract_strided_slice %14 {offsets = [0, 2], sizes = [16, 1], strides = [1, 1]} : vector<16x4xf32> to vector<16x1xf32>
    %56 = vector.extract_strided_slice %18 {offsets = [2, 0], sizes = [1, 16], strides = [1, 1]} : vector<4x16xf32> to vector<1x16xf32>
    %57 = vector.broadcast %55 : vector<16x1xf32> to vector<16x16xf32>
    %58 = vector.broadcast %56 : vector<1x16xf32> to vector<16x16xf32>
    %59 = arith.addf %57, %58 : vector<16x16xf32>
    %cst_25 = arith.constant 0.000000e+00 : f32
    %60 = vector.broadcast %cst_25 : f32 to vector<16x16xf32>
    %61 = arith.cmpf oge, %59, %60 : vector<16x16xf32>
    %cst_26 = arith.constant 2.000000e-01 : f32
    %62 = vector.broadcast %cst_26 : f32 to vector<16x16xf32>
    %63 = arith.mulf %62, %59 : vector<16x16xf32>
    %64 = arith.select %61, %59, %63 : vector<16x16xi1>, vector<16x16xf32>
    %65 = arith.addf %64, %5 : vector<16x16xf32>
    %cst_27 = arith.constant dense<0xFF800000> : vector<16xf32>
    %66 = vector.multi_reduction <maximumf>, %65, %cst_27 [1] : vector<16x16xf32> to vector<16xf32>
    %67 = vector.shape_cast %66 : vector<16xf32> to vector<16x1xf32>
    %68 = vector.broadcast %67 : vector<16x1xf32> to vector<16x16xf32>
    %69 = arith.subf %65, %68 : vector<16x16xf32>
    %70 = math.exp %69 : vector<16x16xf32>
    %cst_28 = arith.constant dense<0.000000e+00> : vector<16xf32>
    %71 = vector.multi_reduction <add>, %70, %cst_28 [1] : vector<16x16xf32> to vector<16xf32>
    %72 = vector.shape_cast %71 : vector<16xf32> to vector<16x1xf32>
    %73 = vector.extract_strided_slice %14 {offsets = [0, 3], sizes = [16, 1], strides = [1, 1]} : vector<16x4xf32> to vector<16x1xf32>
    %74 = vector.extract_strided_slice %18 {offsets = [3, 0], sizes = [1, 16], strides = [1, 1]} : vector<4x16xf32> to vector<1x16xf32>
    %75 = vector.broadcast %73 : vector<16x1xf32> to vector<16x16xf32>
    %76 = vector.broadcast %74 : vector<1x16xf32> to vector<16x16xf32>
    %77 = arith.addf %75, %76 : vector<16x16xf32>
    %cst_29 = arith.constant 0.000000e+00 : f32
    %78 = vector.broadcast %cst_29 : f32 to vector<16x16xf32>
    %79 = arith.cmpf oge, %77, %78 : vector<16x16xf32>
    %cst_30 = arith.constant 2.000000e-01 : f32
    %80 = vector.broadcast %cst_30 : f32 to vector<16x16xf32>
    %81 = arith.mulf %80, %77 : vector<16x16xf32>
    %82 = arith.select %79, %77, %81 : vector<16x16xi1>, vector<16x16xf32>
    %83 = arith.addf %82, %5 : vector<16x16xf32>
    %cst_31 = arith.constant dense<0xFF800000> : vector<16xf32>
    %84 = vector.multi_reduction <maximumf>, %83, %cst_31 [1] : vector<16x16xf32> to vector<16xf32>
    %85 = vector.shape_cast %84 : vector<16xf32> to vector<16x1xf32>
    %86 = vector.broadcast %85 : vector<16x1xf32> to vector<16x16xf32>
    %87 = arith.subf %83, %86 : vector<16x16xf32>
    %88 = math.exp %87 : vector<16x16xf32>
    %cst_32 = arith.constant dense<0.000000e+00> : vector<16xf32>
    %89 = vector.multi_reduction <add>, %88, %cst_32 [1] : vector<16x16xf32> to vector<16xf32>
    %90 = vector.shape_cast %89 : vector<16xf32> to vector<16x1xf32>
    %c0_33 = arith.constant 0 : index
    %c0_34 = arith.constant 0 : index
    %91 = vector.load %arg7[%c0_33, %c0_34] : memref<4x32xf32, #tpu.memory_space<vmem>>, vector<4x32xf32>
    %92 = tpu.concatenate %34, %52, %70, %88 in 1 : vector<16x16xf32>, vector<16x16xf32>, vector<16x16xf32>, vector<16x16xf32> -> vector<16x64xf32>
    %93 = vector.extract_strided_slice %91 {offsets = [0, 0], sizes = [1, 32], strides = [1, 1]} : vector<4x32xf32> to vector<1x32xf32>
    %94 = vector.broadcast %93 : vector<1x32xf32> to vector<16x32xf32>
    %95 = arith.mulf %10, %94 : vector<16x32xf32>
    %96 = vector.extract_strided_slice %91 {offsets = [1, 0], sizes = [1, 32], strides = [1, 1]} : vector<4x32xf32> to vector<1x32xf32>
    %97 = vector.broadcast %96 : vector<1x32xf32> to vector<16x32xf32>
    %98 = arith.mulf %10, %97 : vector<16x32xf32>
    %99 = vector.extract_strided_slice %91 {offsets = [2, 0], sizes = [1, 32], strides = [1, 1]} : vector<4x32xf32> to vector<1x32xf32>
    %100 = vector.broadcast %99 : vector<1x32xf32> to vector<16x32xf32>
    %101 = arith.mulf %10, %100 : vector<16x32xf32>
    %102 = vector.extract_strided_slice %91 {offsets = [3, 0], sizes = [1, 32], strides = [1, 1]} : vector<4x32xf32> to vector<1x32xf32>
    %103 = vector.broadcast %102 : vector<1x32xf32> to vector<16x32xf32>
    %104 = arith.mulf %10, %103 : vector<16x32xf32>
    %105 = tpu.concatenate %95, %98, %101, %104 in 0 : vector<16x32xf32>, vector<16x32xf32>, vector<16x32xf32>, vector<16x32xf32> -> vector<64x32xf32>
    %106 = vector.shape_cast %36 : vector<16x1xf32> to vector<16x1xf32>
    %107 = vector.broadcast %106 : vector<16x1xf32> to vector<16x8xf32>
    %108 = vector.shape_cast %54 : vector<16x1xf32> to vector<16x1xf32>
    %109 = vector.broadcast %108 : vector<16x1xf32> to vector<16x8xf32>
    %110 = vector.shape_cast %72 : vector<16x1xf32> to vector<16x1xf32>
    %111 = vector.broadcast %110 : vector<16x1xf32> to vector<16x8xf32>
    %112 = vector.shape_cast %90 : vector<16x1xf32> to vector<16x1xf32>
    %113 = vector.broadcast %112 : vector<16x1xf32> to vector<16x8xf32>
    %114 = tpu.concatenate %107, %109, %111, %113 in 1 : vector<16x8xf32>, vector<16x8xf32>, vector<16x8xf32>, vector<16x8xf32> -> vector<16x32xf32>
    %cst_35 = arith.constant dense<0.000000e+00> : vector<16x32xf32>
    %115 = tpu.matmul %92, %105, %cst_35 {dimension_numbers = #tpu.dot_dimension_numbers<[1], [0], [0], [1], [0, 0, 1, 1], [], []>} : vector<16x64xf32>, vector<64x32xf32>, vector<16x32xf32> -> vector<16x32xf32>
    %116 = arith.divf %115, %114 : vector<16x32xf32>
    %117 = vector.broadcast %9 : vector<1x32xf32> to vector<16x32xf32>
    %118 = arith.addf %116, %117 : vector<16x32xf32>
    %cst_36 = arith.constant 0.000000e+00 : f32
    %119 = vector.broadcast %cst_36 : f32 to vector<16x32xf32>
    %120 = arith.cmpf oge, %118, %119 : vector<16x32xf32>
    %cst_37 = arith.constant 0.00999999977 : f32
    %121 = vector.broadcast %cst_37 : f32 to vector<16x32xf32>
    %122 = arith.mulf %121, %118 : vector<16x32xf32>
    %123 = arith.select %120, %118, %122 : vector<16x32xi1>, vector<16x32xf32>
    %c0_38 = arith.constant 0 : index
    %c0_39 = arith.constant 0 : index
    %124 = vector.load %arg8[%c0_38, %c0_39] : memref<32x32xf32, #tpu.memory_space<vmem>>, vector<32x32xf32>
    %c0_40 = arith.constant 0 : index
    %c0_41 = arith.constant 0 : index
    %125 = vector.load %arg9[%c0_40, %c0_41] : memref<1x32xf32, #tpu.memory_space<vmem>>, vector<1x32xf32>
    %c0_42 = arith.constant 0 : index
    %c0_43 = arith.constant 0 : index
    %126 = vector.load %arg10[%c0_42, %c0_43] : memref<1x32xf32, #tpu.memory_space<vmem>>, vector<1x32xf32>
    %c0_44 = arith.constant 0 : index
    %c0_45 = arith.constant 0 : index
    %127 = vector.load %arg11[%c0_44, %c0_45] : memref<1x32xf32, #tpu.memory_space<vmem>>, vector<1x32xf32>
    %cst_46 = arith.constant dense<0.000000e+00> : vector<16x32xf32>
    %128 = tpu.matmul %123, %124, %cst_46 {dimension_numbers = #tpu.dot_dimension_numbers<[1], [0], [0], [1], [0, 0, 1, 1], [], []>} : vector<16x32xf32>, vector<32x32xf32>, vector<16x32xf32> -> vector<16x32xf32>
    %c0_47 = arith.constant 0 : index
    %c0_48 = arith.constant 0 : index
    %129 = vector.load %arg12[%c0_47, %c0_48] : memref<32x4xf32, #tpu.memory_space<vmem>>, vector<32x4xf32>
    %130 = vector.broadcast %126 : vector<1x32xf32> to vector<16x32xf32>
    %131 = arith.mulf %128, %130 : vector<16x32xf32>
    %cst_49 = arith.constant dense<0.000000e+00> : vector<16x4xf32>
    %132 = tpu.matmul %131, %129, %cst_49 {dimension_numbers = #tpu.dot_dimension_numbers<[1], [0], [0], [1], [0, 0, 1, 1], [], []>} : vector<16x32xf32>, vector<32x4xf32>, vector<16x4xf32> -> vector<16x4xf32>
    %133 = vector.broadcast %125 : vector<1x32xf32> to vector<16x32xf32>
    %134 = arith.mulf %128, %133 : vector<16x32xf32>
    %cst_50 = arith.constant dense<0.000000e+00> : vector<16x4xf32>
    %135 = tpu.matmul %134, %129, %cst_50 {dimension_numbers = #tpu.dot_dimension_numbers<[1], [0], [0], [1], [0, 0, 1, 1], [], []>} : vector<16x32xf32>, vector<32x4xf32>, vector<16x4xf32> -> vector<16x4xf32>
    %136 = tpu.transpose %135, [1, 0] : vector<16x4xf32> -> vector<4x16xf32>
    %137 = vector.extract_strided_slice %132 {offsets = [0, 0], sizes = [16, 1], strides = [1, 1]} : vector<16x4xf32> to vector<16x1xf32>
    %138 = vector.extract_strided_slice %136 {offsets = [0, 0], sizes = [1, 16], strides = [1, 1]} : vector<4x16xf32> to vector<1x16xf32>
    %139 = vector.broadcast %137 : vector<16x1xf32> to vector<16x16xf32>
    %140 = vector.broadcast %138 : vector<1x16xf32> to vector<16x16xf32>
    %141 = arith.addf %139, %140 : vector<16x16xf32>
    %cst_51 = arith.constant 0.000000e+00 : f32
    %142 = vector.broadcast %cst_51 : f32 to vector<16x16xf32>
    %143 = arith.cmpf oge, %141, %142 : vector<16x16xf32>
    %cst_52 = arith.constant 2.000000e-01 : f32
    %144 = vector.broadcast %cst_52 : f32 to vector<16x16xf32>
    %145 = arith.mulf %144, %141 : vector<16x16xf32>
    %146 = arith.select %143, %141, %145 : vector<16x16xi1>, vector<16x16xf32>
    %147 = arith.addf %146, %5 : vector<16x16xf32>
    %cst_53 = arith.constant dense<0xFF800000> : vector<16xf32>
    %148 = vector.multi_reduction <maximumf>, %147, %cst_53 [1] : vector<16x16xf32> to vector<16xf32>
    %149 = vector.shape_cast %148 : vector<16xf32> to vector<16x1xf32>
    %150 = vector.broadcast %149 : vector<16x1xf32> to vector<16x16xf32>
    %151 = arith.subf %147, %150 : vector<16x16xf32>
    %152 = math.exp %151 : vector<16x16xf32>
    %cst_54 = arith.constant dense<0.000000e+00> : vector<16xf32>
    %153 = vector.multi_reduction <add>, %152, %cst_54 [1] : vector<16x16xf32> to vector<16xf32>
    %154 = vector.shape_cast %153 : vector<16xf32> to vector<16x1xf32>
    %155 = vector.extract_strided_slice %132 {offsets = [0, 1], sizes = [16, 1], strides = [1, 1]} : vector<16x4xf32> to vector<16x1xf32>
    %156 = vector.extract_strided_slice %136 {offsets = [1, 0], sizes = [1, 16], strides = [1, 1]} : vector<4x16xf32> to vector<1x16xf32>
    %157 = vector.broadcast %155 : vector<16x1xf32> to vector<16x16xf32>
    %158 = vector.broadcast %156 : vector<1x16xf32> to vector<16x16xf32>
    %159 = arith.addf %157, %158 : vector<16x16xf32>
    %cst_55 = arith.constant 0.000000e+00 : f32
    %160 = vector.broadcast %cst_55 : f32 to vector<16x16xf32>
    %161 = arith.cmpf oge, %159, %160 : vector<16x16xf32>
    %cst_56 = arith.constant 2.000000e-01 : f32
    %162 = vector.broadcast %cst_56 : f32 to vector<16x16xf32>
    %163 = arith.mulf %162, %159 : vector<16x16xf32>
    %164 = arith.select %161, %159, %163 : vector<16x16xi1>, vector<16x16xf32>
    %165 = arith.addf %164, %5 : vector<16x16xf32>
    %cst_57 = arith.constant dense<0xFF800000> : vector<16xf32>
    %166 = vector.multi_reduction <maximumf>, %165, %cst_57 [1] : vector<16x16xf32> to vector<16xf32>
    %167 = vector.shape_cast %166 : vector<16xf32> to vector<16x1xf32>
    %168 = vector.broadcast %167 : vector<16x1xf32> to vector<16x16xf32>
    %169 = arith.subf %165, %168 : vector<16x16xf32>
    %170 = math.exp %169 : vector<16x16xf32>
    %cst_58 = arith.constant dense<0.000000e+00> : vector<16xf32>
    %171 = vector.multi_reduction <add>, %170, %cst_58 [1] : vector<16x16xf32> to vector<16xf32>
    %172 = vector.shape_cast %171 : vector<16xf32> to vector<16x1xf32>
    %173 = vector.extract_strided_slice %132 {offsets = [0, 2], sizes = [16, 1], strides = [1, 1]} : vector<16x4xf32> to vector<16x1xf32>
    %174 = vector.extract_strided_slice %136 {offsets = [2, 0], sizes = [1, 16], strides = [1, 1]} : vector<4x16xf32> to vector<1x16xf32>
    %175 = vector.broadcast %173 : vector<16x1xf32> to vector<16x16xf32>
    %176 = vector.broadcast %174 : vector<1x16xf32> to vector<16x16xf32>
    %177 = arith.addf %175, %176 : vector<16x16xf32>
    %cst_59 = arith.constant 0.000000e+00 : f32
    %178 = vector.broadcast %cst_59 : f32 to vector<16x16xf32>
    %179 = arith.cmpf oge, %177, %178 : vector<16x16xf32>
    %cst_60 = arith.constant 2.000000e-01 : f32
    %180 = vector.broadcast %cst_60 : f32 to vector<16x16xf32>
    %181 = arith.mulf %180, %177 : vector<16x16xf32>
    %182 = arith.select %179, %177, %181 : vector<16x16xi1>, vector<16x16xf32>
    %183 = arith.addf %182, %5 : vector<16x16xf32>
    %cst_61 = arith.constant dense<0xFF800000> : vector<16xf32>
    %184 = vector.multi_reduction <maximumf>, %183, %cst_61 [1] : vector<16x16xf32> to vector<16xf32>
    %185 = vector.shape_cast %184 : vector<16xf32> to vector<16x1xf32>
    %186 = vector.broadcast %185 : vector<16x1xf32> to vector<16x16xf32>
    %187 = arith.subf %183, %186 : vector<16x16xf32>
    %188 = math.exp %187 : vector<16x16xf32>
    %cst_62 = arith.constant dense<0.000000e+00> : vector<16xf32>
    %189 = vector.multi_reduction <add>, %188, %cst_62 [1] : vector<16x16xf32> to vector<16xf32>
    %190 = vector.shape_cast %189 : vector<16xf32> to vector<16x1xf32>
    %191 = vector.extract_strided_slice %132 {offsets = [0, 3], sizes = [16, 1], strides = [1, 1]} : vector<16x4xf32> to vector<16x1xf32>
    %192 = vector.extract_strided_slice %136 {offsets = [3, 0], sizes = [1, 16], strides = [1, 1]} : vector<4x16xf32> to vector<1x16xf32>
    %193 = vector.broadcast %191 : vector<16x1xf32> to vector<16x16xf32>
    %194 = vector.broadcast %192 : vector<1x16xf32> to vector<16x16xf32>
    %195 = arith.addf %193, %194 : vector<16x16xf32>
    %cst_63 = arith.constant 0.000000e+00 : f32
    %196 = vector.broadcast %cst_63 : f32 to vector<16x16xf32>
    %197 = arith.cmpf oge, %195, %196 : vector<16x16xf32>
    %cst_64 = arith.constant 2.000000e-01 : f32
    %198 = vector.broadcast %cst_64 : f32 to vector<16x16xf32>
    %199 = arith.mulf %198, %195 : vector<16x16xf32>
    %200 = arith.select %197, %195, %199 : vector<16x16xi1>, vector<16x16xf32>
    %201 = arith.addf %200, %5 : vector<16x16xf32>
    %cst_65 = arith.constant dense<0xFF800000> : vector<16xf32>
    %202 = vector.multi_reduction <maximumf>, %201, %cst_65 [1] : vector<16x16xf32> to vector<16xf32>
    %203 = vector.shape_cast %202 : vector<16xf32> to vector<16x1xf32>
    %204 = vector.broadcast %203 : vector<16x1xf32> to vector<16x16xf32>
    %205 = arith.subf %201, %204 : vector<16x16xf32>
    %206 = math.exp %205 : vector<16x16xf32>
    %cst_66 = arith.constant dense<0.000000e+00> : vector<16xf32>
    %207 = vector.multi_reduction <add>, %206, %cst_66 [1] : vector<16x16xf32> to vector<16xf32>
    %208 = vector.shape_cast %207 : vector<16xf32> to vector<16x1xf32>
    %c0_67 = arith.constant 0 : index
    %c0_68 = arith.constant 0 : index
    %209 = vector.load %arg13[%c0_67, %c0_68] : memref<4x32xf32, #tpu.memory_space<vmem>>, vector<4x32xf32>
    %210 = tpu.concatenate %152, %170, %188, %206 in 1 : vector<16x16xf32>, vector<16x16xf32>, vector<16x16xf32>, vector<16x16xf32> -> vector<16x64xf32>
    %211 = vector.extract_strided_slice %209 {offsets = [0, 0], sizes = [1, 32], strides = [1, 1]} : vector<4x32xf32> to vector<1x32xf32>
    %212 = vector.broadcast %211 : vector<1x32xf32> to vector<16x32xf32>
    %213 = arith.mulf %128, %212 : vector<16x32xf32>
    %214 = vector.extract_strided_slice %209 {offsets = [1, 0], sizes = [1, 32], strides = [1, 1]} : vector<4x32xf32> to vector<1x32xf32>
    %215 = vector.broadcast %214 : vector<1x32xf32> to vector<16x32xf32>
    %216 = arith.mulf %128, %215 : vector<16x32xf32>
    %217 = vector.extract_strided_slice %209 {offsets = [2, 0], sizes = [1, 32], strides = [1, 1]} : vector<4x32xf32> to vector<1x32xf32>
    %218 = vector.broadcast %217 : vector<1x32xf32> to vector<16x32xf32>
    %219 = arith.mulf %128, %218 : vector<16x32xf32>
    %220 = vector.extract_strided_slice %209 {offsets = [3, 0], sizes = [1, 32], strides = [1, 1]} : vector<4x32xf32> to vector<1x32xf32>
    %221 = vector.broadcast %220 : vector<1x32xf32> to vector<16x32xf32>
    %222 = arith.mulf %128, %221 : vector<16x32xf32>
    %223 = tpu.concatenate %213, %216, %219, %222 in 0 : vector<16x32xf32>, vector<16x32xf32>, vector<16x32xf32>, vector<16x32xf32> -> vector<64x32xf32>
    %224 = vector.shape_cast %154 : vector<16x1xf32> to vector<16x1xf32>
    %225 = vector.broadcast %224 : vector<16x1xf32> to vector<16x8xf32>
    %226 = vector.shape_cast %172 : vector<16x1xf32> to vector<16x1xf32>
    %227 = vector.broadcast %226 : vector<16x1xf32> to vector<16x8xf32>
    %228 = vector.shape_cast %190 : vector<16x1xf32> to vector<16x1xf32>
    %229 = vector.broadcast %228 : vector<16x1xf32> to vector<16x8xf32>
    %230 = vector.shape_cast %208 : vector<16x1xf32> to vector<16x1xf32>
    %231 = vector.broadcast %230 : vector<16x1xf32> to vector<16x8xf32>
    %232 = tpu.concatenate %225, %227, %229, %231 in 1 : vector<16x8xf32>, vector<16x8xf32>, vector<16x8xf32>, vector<16x8xf32> -> vector<16x32xf32>
    %cst_69 = arith.constant dense<0.000000e+00> : vector<16x32xf32>
    %233 = tpu.matmul %210, %223, %cst_69 {dimension_numbers = #tpu.dot_dimension_numbers<[1], [0], [0], [1], [0, 0, 1, 1], [], []>} : vector<16x64xf32>, vector<64x32xf32>, vector<16x32xf32> -> vector<16x32xf32>
    %234 = arith.divf %233, %232 : vector<16x32xf32>
    %235 = vector.broadcast %127 : vector<1x32xf32> to vector<16x32xf32>
    %236 = arith.addf %234, %235 : vector<16x32xf32>
    %cst_70 = arith.constant 0.000000e+00 : f32
    %237 = vector.broadcast %cst_70 : f32 to vector<16x32xf32>
    %238 = arith.cmpf oge, %236, %237 : vector<16x32xf32>
    %cst_71 = arith.constant 0.00999999977 : f32
    %239 = vector.broadcast %cst_71 : f32 to vector<16x32xf32>
    %240 = arith.mulf %239, %236 : vector<16x32xf32>
    %241 = arith.select %238, %236, %240 : vector<16x32xi1>, vector<16x32xf32>
    %c0_72 = arith.constant 0 : index
    %c0_73 = arith.constant 0 : index
    %242 = vector.load %arg14[%c0_72, %c0_73] : memref<32x4xf32, #tpu.memory_space<vmem>>, vector<32x4xf32>
    %c0_74 = arith.constant 0 : index
    %c0_75 = arith.constant 0 : index
    %243 = vector.load %arg15[%c0_74, %c0_75] : memref<1x4xf32, #tpu.memory_space<vmem>>, vector<1x4xf32>
    %c0_76 = arith.constant 0 : index
    %c0_77 = arith.constant 0 : index
    %244 = vector.load %arg16[%c0_76, %c0_77] : memref<1x4xf32, #tpu.memory_space<vmem>>, vector<1x4xf32>
    %c0_78 = arith.constant 0 : index
    %c0_79 = arith.constant 0 : index
    %245 = vector.load %arg17[%c0_78, %c0_79] : memref<1x4xf32, #tpu.memory_space<vmem>>, vector<1x4xf32>
    %cst_80 = arith.constant dense<0.000000e+00> : vector<16x4xf32>
    %246 = tpu.matmul %241, %242, %cst_80 {dimension_numbers = #tpu.dot_dimension_numbers<[1], [0], [0], [1], [0, 0, 1, 1], [], []>} : vector<16x32xf32>, vector<32x4xf32>, vector<16x4xf32> -> vector<16x4xf32>
    %247 = vector.broadcast %244 : vector<1x4xf32> to vector<16x4xf32>
    %248 = arith.mulf %246, %247 : vector<16x4xf32>
    %cst_81 = arith.constant dense<0.000000e+00> : vector<16xf32>
    %249 = vector.multi_reduction <add>, %248, %cst_81 [1] : vector<16x4xf32> to vector<16xf32>
    %250 = vector.shape_cast %249 : vector<16xf32> to vector<16x1xf32>
    %251 = vector.broadcast %243 : vector<1x4xf32> to vector<16x4xf32>
    %252 = arith.mulf %246, %251 : vector<16x4xf32>
    %cst_82 = arith.constant dense<0.000000e+00> : vector<16xf32>
    %253 = vector.multi_reduction <add>, %252, %cst_82 [1] : vector<16x4xf32> to vector<16xf32>
    %254 = vector.shape_cast %253 : vector<16xf32> to vector<16x1xf32>
    %255 = tpu.transpose %254, [1, 0] : vector<16x1xf32> -> vector<1x16xf32>
    %256 = vector.broadcast %250 : vector<16x1xf32> to vector<16x16xf32>
    %257 = vector.broadcast %255 : vector<1x16xf32> to vector<16x16xf32>
    %258 = arith.addf %256, %257 : vector<16x16xf32>
    %cst_83 = arith.constant 0.000000e+00 : f32
    %259 = vector.broadcast %cst_83 : f32 to vector<16x16xf32>
    %260 = arith.cmpf oge, %258, %259 : vector<16x16xf32>
    %cst_84 = arith.constant 2.000000e-01 : f32
    %261 = vector.broadcast %cst_84 : f32 to vector<16x16xf32>
    %262 = arith.mulf %261, %258 : vector<16x16xf32>
    %263 = arith.select %260, %258, %262 : vector<16x16xi1>, vector<16x16xf32>
    %264 = arith.addf %263, %5 : vector<16x16xf32>
    %cst_85 = arith.constant dense<0xFF800000> : vector<16xf32>
    %265 = vector.multi_reduction <maximumf>, %264, %cst_85 [1] : vector<16x16xf32> to vector<16xf32>
    %266 = vector.shape_cast %265 : vector<16xf32> to vector<16x1xf32>
    %267 = vector.broadcast %266 : vector<16x1xf32> to vector<16x16xf32>
    %268 = arith.subf %264, %267 : vector<16x16xf32>
    %269 = math.exp %268 : vector<16x16xf32>
    %cst_86 = arith.constant dense<0.000000e+00> : vector<16xf32>
    %270 = vector.multi_reduction <add>, %269, %cst_86 [1] : vector<16x16xf32> to vector<16xf32>
    %271 = vector.shape_cast %270 : vector<16xf32> to vector<16x1xf32>
    %cst_87 = arith.constant dense<0.000000e+00> : vector<16x4xf32>
    %272 = tpu.matmul %269, %246, %cst_87 {dimension_numbers = #tpu.dot_dimension_numbers<[1], [0], [0], [1], [0, 0, 1, 1], [], []>} : vector<16x16xf32>, vector<16x4xf32>, vector<16x4xf32> -> vector<16x4xf32>
    %273 = vector.broadcast %271 : vector<16x1xf32> to vector<16x4xf32>
    %274 = arith.divf %272, %273 : vector<16x4xf32>
    %275 = vector.broadcast %245 : vector<1x4xf32> to vector<16x4xf32>
    %276 = arith.addf %274, %275 : vector<16x4xf32>
    %c0_88 = arith.constant 0 : index
    %c0_89 = arith.constant 0 : index
    %277 = vector.load %arg20[%c0_88, %c0_89] : memref<4x8xf32, #tpu.memory_space<vmem>>, vector<4x8xf32>
    %c0_90 = arith.constant 0 : index
    %c0_91 = arith.constant 0 : index
    %278 = vector.load %arg21[%c0_90, %c0_91] : memref<1x8xf32, #tpu.memory_space<vmem>>, vector<1x8xf32>
    %c0_92 = arith.constant 0 : index
    %c0_93 = arith.constant 0 : index
    %279 = vector.load %arg22[%c0_92, %c0_93] : memref<1x8xf32, #tpu.memory_space<vmem>>, vector<1x8xf32>
    %c0_94 = arith.constant 0 : index
    %c0_95 = arith.constant 0 : index
    %280 = vector.load %arg23[%c0_94, %c0_95] : memref<1x8xf32, #tpu.memory_space<vmem>>, vector<1x8xf32>
    %cst_96 = arith.constant dense<0.000000e+00> : vector<16x8xf32>
    %281 = tpu.matmul %276, %277, %cst_96 {dimension_numbers = #tpu.dot_dimension_numbers<[1], [0], [0], [1], [0, 0, 1, 1], [], []>} : vector<16x4xf32>, vector<4x8xf32>, vector<16x8xf32> -> vector<16x8xf32>
    %282 = vector.broadcast %279 : vector<1x8xf32> to vector<16x8xf32>
    %283 = arith.mulf %281, %282 : vector<16x8xf32>
    %cst_97 = arith.constant dense<0.000000e+00> : vector<16xf32>
    %284 = vector.multi_reduction <add>, %283, %cst_97 [1] : vector<16x8xf32> to vector<16xf32>
    %285 = vector.shape_cast %284 : vector<16xf32> to vector<16x1xf32>
    %286 = vector.broadcast %278 : vector<1x8xf32> to vector<16x8xf32>
    %287 = arith.mulf %281, %286 : vector<16x8xf32>
    %cst_98 = arith.constant dense<0.000000e+00> : vector<16xf32>
    %288 = vector.multi_reduction <add>, %287, %cst_98 [1] : vector<16x8xf32> to vector<16xf32>
    %289 = vector.shape_cast %288 : vector<16xf32> to vector<16x1xf32>
    %290 = tpu.transpose %289, [1, 0] : vector<16x1xf32> -> vector<1x16xf32>
    %291 = vector.broadcast %285 : vector<16x1xf32> to vector<16x16xf32>
    %292 = vector.broadcast %290 : vector<1x16xf32> to vector<16x16xf32>
    %293 = arith.addf %291, %292 : vector<16x16xf32>
    %cst_99 = arith.constant 0.000000e+00 : f32
    %294 = vector.broadcast %cst_99 : f32 to vector<16x16xf32>
    %295 = arith.cmpf oge, %293, %294 : vector<16x16xf32>
    %cst_100 = arith.constant 2.000000e-01 : f32
    %296 = vector.broadcast %cst_100 : f32 to vector<16x16xf32>
    %297 = arith.mulf %296, %293 : vector<16x16xf32>
    %298 = arith.select %295, %293, %297 : vector<16x16xi1>, vector<16x16xf32>
    %299 = arith.addf %298, %5 : vector<16x16xf32>
    %cst_101 = arith.constant dense<0xFF800000> : vector<16xf32>
    %300 = vector.multi_reduction <maximumf>, %299, %cst_101 [1] : vector<16x16xf32> to vector<16xf32>
    %301 = vector.shape_cast %300 : vector<16xf32> to vector<16x1xf32>
    %302 = vector.broadcast %301 : vector<16x1xf32> to vector<16x16xf32>
    %303 = arith.subf %299, %302 : vector<16x16xf32>
    %304 = math.exp %303 : vector<16x16xf32>
    %cst_102 = arith.constant dense<0.000000e+00> : vector<16xf32>
    %305 = vector.multi_reduction <add>, %304, %cst_102 [1] : vector<16x16xf32> to vector<16xf32>
    %306 = vector.shape_cast %305 : vector<16xf32> to vector<16x1xf32>
    %cst_103 = arith.constant dense<0.000000e+00> : vector<16x8xf32>
    %307 = tpu.matmul %304, %281, %cst_103 {dimension_numbers = #tpu.dot_dimension_numbers<[1], [0], [0], [1], [0, 0, 1, 1], [], []>} : vector<16x16xf32>, vector<16x8xf32>, vector<16x8xf32> -> vector<16x8xf32>
    %308 = vector.broadcast %306 : vector<16x1xf32> to vector<16x8xf32>
    %309 = arith.divf %307, %308 : vector<16x8xf32>
    %310 = vector.broadcast %280 : vector<1x8xf32> to vector<16x8xf32>
    %311 = arith.addf %309, %310 : vector<16x8xf32>
    %cst_104 = arith.constant 0.000000e+00 : f32
    %312 = vector.broadcast %cst_104 : f32 to vector<16x8xf32>
    %313 = arith.cmpf oge, %311, %312 : vector<16x8xf32>
    %cst_105 = arith.constant 0.00999999977 : f32
    %314 = vector.broadcast %cst_105 : f32 to vector<16x8xf32>
    %315 = arith.mulf %314, %311 : vector<16x8xf32>
    %316 = arith.select %313, %311, %315 : vector<16x8xi1>, vector<16x8xf32>
    %c0_106 = arith.constant 0 : index
    %c0_107 = arith.constant 0 : index
    %317 = vector.load %arg26[%c0_106, %c0_107] : memref<8x8xf32, #tpu.memory_space<vmem>>, vector<8x8xf32>
    %cst_108 = arith.constant dense<0.000000e+00> : vector<16x8xf32>
    %318 = tpu.matmul %316, %317, %cst_108 {dimension_numbers = #tpu.dot_dimension_numbers<[1], [0], [0], [1], [0, 0, 1, 1], [], []>} : vector<16x8xf32>, vector<8x8xf32>, vector<16x8xf32> -> vector<16x8xf32>
    %c0_109 = arith.constant 0 : index
    %c0_110 = arith.constant 0 : index
    %319 = vector.load %arg27[%c0_109, %c0_110] : memref<1x8xf32, #tpu.memory_space<vmem>>, vector<1x8xf32>
    %320 = vector.broadcast %319 : vector<1x8xf32> to vector<16x8xf32>
    %321 = arith.addf %318, %320 : vector<16x8xf32>
    %322 = arith.addf %321, %0 : vector<16x8xf32>
    %c0_111 = arith.constant 0 : index
    %c0_112 = arith.constant 0 : index
    %323 = vector.load %arg28[%c0_111, %c0_112] : memref<16x8xf32, #tpu.memory_space<vmem>>, vector<16x8xf32>
    tpu.vector_store %arg28[%c0_111, %c0_112], %322 {strides = array<i32>} : memref<16x8xf32, #tpu.memory_space<vmem>>, vector<16x8xf32>,
    %c0_113 = arith.constant 0 : index
    %c0_114 = arith.constant 0 : index
    %324 = vector.load %arg29[%c0_113, %c0_114] : memref<16x4xf32, #tpu.memory_space<vmem>>, vector<16x4xf32>
    tpu.vector_store %arg29[%c0_113, %c0_114], %276 {strides = array<i32>} : memref<16x4xf32, #tpu.memory_space<vmem>>, vector<16x4xf32>,
    return
  }
}

</mosaic_0001>

<llo_original>
// kernel: gat_link_autoencoder_forward.1
$region0: #{gat_link_autoencoder_forward.1}
  #allocation0 [shape = 'u32[]', space=smem, size = 0x4, offset = 0x4, fixed_abs, tag = 'smem constant byte address 0x4 - core index']
  #allocation1 [shape = 'u32[144,128]{1,0:T(1,128)}', space=vmem, size = 0x12000, scoped, tag = 'internal scratch']
  %s0 = inlined_call_operand.smem [shape: u32[30], index: -1, kind: input, shape index: {}]
  %s1 = sld [smem:[%s0]]
  %s2 = scalar_lea.smem %s0, 1
  %s3 = sld [smem:[%s2]]
  %s4 = scalar_lea.smem %s0, 2
  %s5 = sld [smem:[%s4]]
  %s6 = scalar_lea.smem %s0, 3
  %s7 = sld [smem:[%s6]]
  %s8 = scalar_lea.smem %s0, 4
  %s9 = sld [smem:[%s8]]
  %s10 = scalar_lea.smem %s0, 5
  %s11 = sld [smem:[%s10]]
  %s12 = scalar_lea.smem %s0, 6
  %s13 = sld [smem:[%s12]]
  %s14 = scalar_lea.smem %s0, 7
  %s15 = sld [smem:[%s14]]
  %s16 = scalar_lea.smem %s0, 8
  %s17 = sld [smem:[%s16]]
  %s18 = scalar_lea.smem %s0, 9
  %s19 = sld [smem:[%s18]]
  %s20 = scalar_lea.smem %s0, 10
  %s21 = sld [smem:[%s20]]
  %s22 = scalar_lea.smem %s0, 11
  %s23 = sld [smem:[%s22]]
  %s24 = scalar_lea.smem %s0, 12
  %s25 = sld [smem:[%s24]]
  %s26 = scalar_lea.smem %s0, 13
  %s27 = sld [smem:[%s26]]
  %s28 = scalar_lea.smem %s0, 14
  %s29 = sld [smem:[%s28]]
  %s30 = scalar_lea.smem %s0, 15
  %s31 = sld [smem:[%s30]]
  %s32 = scalar_lea.smem %s0, 16
  %s33 = sld [smem:[%s32]]
  %s34 = scalar_lea.smem %s0, 17
  %s35 = sld [smem:[%s34]]
  %s36 = scalar_lea.smem %s0, 18
  %s37 = sld [smem:[%s36]]
  %s38 = scalar_lea.smem %s0, 19
  %s39 = sld [smem:[%s38]]
  %s40 = scalar_lea.smem %s0, 20
  %s41 = sld [smem:[%s40]]
  %s42 = scalar_lea.smem %s0, 21
  %s43 = sld [smem:[%s42]]
  %s44 = scalar_lea.smem %s0, 22
  %s45 = sld [smem:[%s44]]
  %s46 = scalar_lea.smem %s0, 23
  %s47 = sld [smem:[%s46]]
  %s48 = scalar_lea.smem %s0, 24
  %s49 = sld [smem:[%s48]]
  %s50 = scalar_lea.smem %s0, 25
  %s51 = sld [smem:[%s50]]
  %s52 = scalar_lea.smem %s0, 26
  %s53 = sld [smem:[%s52]]
  %s54 = scalar_lea.smem %s0, 27
  %s55 = sld [smem:[%s54]]
  %s56 = scalar_lea.smem %s0, 28
  %s57 = sld [smem:[%s56]]
  %s58 = scalar_lea.smem %s0, 29
  %s59 = sld [smem:[%s58]]
  %60 = xla_tuple %s57, %s59
  %s61 = sld [smem:[#allocation0]]
  $region130: #{gat_link_autoencoder_forward.1} parent=0
    _
  %s63 = ssub.s32 1, %s61
  %s64 = scalar_select 0, %s63, %s61
  // Predicated region
  $region2: #{gat_link_autoencoder_forward.1} parent=0 // pred_check
    _
  $region3: #{gat_link_autoencoder_forward.1} parent=0 // pred_check_branch
    %66 = sbr.rel (0) target = $region5
  $region4: #{gat_link_autoencoder_forward.1} parent=0 // pred_region
    _
  $region5: #{gat_link_autoencoder_forward.1} parent=0 // pred_fallthru
    _
  // Predicated region
  $region6: #{gat_link_autoencoder_forward.1} parent=0 // pred_check
    _
  $region7: #{gat_link_autoencoder_forward.1} parent=0 // pred_check_branch
    %68 = sbr.rel (0) target = $region9
  $region8: #{gat_link_autoencoder_forward.1} parent=0 // pred_region
    _
  $region9: #{gat_link_autoencoder_forward.1} parent=0 // pred_fallthru
    _
  // Predicated region
  $region10: #{gat_link_autoencoder_forward.1} parent=0 // pred_check
    _
  $region11: #{gat_link_autoencoder_forward.1} parent=0 // pred_check_branch
    %70 = sbr.rel (0) target = $region13
  $region12: #{gat_link_autoencoder_forward.1} parent=0 // pred_region
    _
  $region13: #{gat_link_autoencoder_forward.1} parent=0 // pred_fallthru
    _
  // Predicated region
  $region14: #{gat_link_autoencoder_forward.1} parent=0 // pred_check
    _
  $region15: #{gat_link_autoencoder_forward.1} parent=0 // pred_check_branch
    %72 = sbr.rel (0) target = $region17
  $region16: #{gat_link_autoencoder_forward.1} parent=0 // pred_region
    _
  $region17: #{gat_link_autoencoder_forward.1} parent=0 // pred_fallthru
    _
  // Predicated region
  $region18: #{gat_link_autoencoder_forward.1} parent=0 // pred_check
    _
  $region19: #{gat_link_autoencoder_forward.1} parent=0 // pred_check_branch
    %74 = sbr.rel (0) target = $region21
  $region20: #{gat_link_autoencoder_forward.1} parent=0 // pred_region
    _
  $region21: #{gat_link_autoencoder_forward.1} parent=0 // pred_fallthru
    _
  // Predicated region
  $region22: #{gat_link_autoencoder_forward.1} parent=0 // pred_check
    _
  $region23: #{gat_link_autoencoder_forward.1} parent=0 // pred_check_branch
    %76 = sbr.rel (0) target = $region25
  $region24: #{gat_link_autoencoder_forward.1} parent=0 // pred_region
    _
  $region25: #{gat_link_autoencoder_forward.1} parent=0 // pred_fallthru
    _
  // Predicated region
  $region26: #{gat_link_autoencoder_forward.1} parent=0 // pred_check
    _
  $region27: #{gat_link_autoencoder_forward.1} parent=0 // pred_check_branch
    %78 = sbr.rel (0) target = $region29
  $region28: #{gat_link_autoencoder_forward.1} parent=0 // pred_region
    _
  $region29: #{gat_link_autoencoder_forward.1} parent=0 // pred_fallthru
    _
  // Predicated region
  $region30: #{gat_link_autoencoder_forward.1} parent=0 // pred_check
    _
  $region31: #{gat_link_autoencoder_forward.1} parent=0 // pred_check_branch
    %80 = sbr.rel (0) target = $region33
  $region32: #{gat_link_autoencoder_forward.1} parent=0 // pred_region
    _
  $region33: #{gat_link_autoencoder_forward.1} parent=0 // pred_fallthru
    _
  // Predicated region
  $region34: #{gat_link_autoencoder_forward.1} parent=0 // pred_check
    _
  $region35: #{gat_link_autoencoder_forward.1} parent=0 // pred_check_branch
    %82 = sbr.rel (0) target = $region37
  $region36: #{gat_link_autoencoder_forward.1} parent=0 // pred_region
    _
  $region37: #{gat_link_autoencoder_forward.1} parent=0 // pred_fallthru
    _
  // Predicated region
  $region38: #{gat_link_autoencoder_forward.1} parent=0 // pred_check
    _
  $region39: #{gat_link_autoencoder_forward.1} parent=0 // pred_check_branch
    %84 = sbr.rel (0) target = $region41
  $region40: #{gat_link_autoencoder_forward.1} parent=0 // pred_region
    _
  $region41: #{gat_link_autoencoder_forward.1} parent=0 // pred_fallthru
    _
  // Predicated region
  $region42: #{gat_link_autoencoder_forward.1} parent=0 // pred_check
    _
  $region43: #{gat_link_autoencoder_forward.1} parent=0 // pred_check_branch
    %86 = sbr.rel (0) target = $region45
  $region44: #{gat_link_autoencoder_forward.1} parent=0 // pred_region
    _
  $region45: #{gat_link_autoencoder_forward.1} parent=0 // pred_fallthru
    _
  // Predicated region
  $region46: #{gat_link_autoencoder_forward.1} parent=0 // pred_check
    _
  $region47: #{gat_link_autoencoder_forward.1} parent=0 // pred_check_branch
    %88 = sbr.rel (0) target = $region49
  $region48: #{gat_link_autoencoder_forward.1} parent=0 // pred_region
    _
  $region49: #{gat_link_autoencoder_forward.1} parent=0 // pred_fallthru
    _
  // Predicated region
  $region50: #{gat_link_autoencoder_forward.1} parent=0 // pred_check
    _
  $region51: #{gat_link_autoencoder_forward.1} parent=0 // pred_check_branch
    %90 = sbr.rel (0) target = $region53
  $region52: #{gat_link_autoencoder_forward.1} parent=0 // pred_region
    _
  $region53: #{gat_link_autoencoder_forward.1} parent=0 // pred_fallthru
    _
  // Predicated region
  $region54: #{gat_link_autoencoder_forward.1} parent=0 // pred_check
    _
  $region55: #{gat_link_autoencoder_forward.1} parent=0 // pred_check_branch
    %92 = sbr.rel (0) target = $region57
  $region56: #{gat_link_autoencoder_forward.1} parent=0 // pred_region
    _
  $region57: #{gat_link_autoencoder_forward.1} parent=0 // pred_fallthru
    _
  // Predicated region
  $region58: #{gat_link_autoencoder_forward.1} parent=0 // pred_check
    _
  $region59: #{gat_link_autoencoder_forward.1} parent=0 // pred_check_branch
    %94 = sbr.rel (0) target = $region61
  $region60: #{gat_link_autoencoder_forward.1} parent=0 // pred_region
    _
  $region61: #{gat_link_autoencoder_forward.1} parent=0 // pred_fallthru
    _
  // Predicated region
  $region62: #{gat_link_autoencoder_forward.1} parent=0 // pred_check
    _
  $region63: #{gat_link_autoencoder_forward.1} parent=0 // pred_check_branch
    %96 = sbr.rel (0) target = $region65
  $region64: #{gat_link_autoencoder_forward.1} parent=0 // pred_region
    _
  $region65: #{gat_link_autoencoder_forward.1} parent=0 // pred_fallthru
    _
  // Predicated region
  $region66: #{gat_link_autoencoder_forward.1} parent=0 // pred_check
    _
  $region67: #{gat_link_autoencoder_forward.1} parent=0 // pred_check_branch
    %98 = sbr.rel (0) target = $region69
  $region68: #{gat_link_autoencoder_forward.1} parent=0 // pred_region
    _
  $region69: #{gat_link_autoencoder_forward.1} parent=0 // pred_fallthru
    _
  // Predicated region
  $region70: #{gat_link_autoencoder_forward.1} parent=0 // pred_check
    _
  $region71: #{gat_link_autoencoder_forward.1} parent=0 // pred_check_branch
    %100 = sbr.rel (0) target = $region73
  $region72: #{gat_link_autoencoder_forward.1} parent=0 // pred_region
    _
  $region73: #{gat_link_autoencoder_forward.1} parent=0 // pred_fallthru
    _
  // Predicated region
  $region74: #{gat_link_autoencoder_forward.1} parent=0 // pred_check
    _
  $region75: #{gat_link_autoencoder_forward.1} parent=0 // pred_check_branch
    %102 = sbr.rel (0) target = $region77
  $region76: #{gat_link_autoencoder_forward.1} parent=0 // pred_region
    _
  $region77: #{gat_link_autoencoder_forward.1} parent=0 // pred_fallthru
    _
  // Predicated region
  $region78: #{gat_link_autoencoder_forward.1} parent=0 // pred_check
    _
  $region79: #{gat_link_autoencoder_forward.1} parent=0 // pred_check_branch
    %104 = sbr.rel (0) target = $region81
  $region80: #{gat_link_autoencoder_forward.1} parent=0 // pred_region
    _
  $region81: #{gat_link_autoencoder_forward.1} parent=0 // pred_fallthru
    _
  // Predicated region
  $region82: #{gat_link_autoencoder_forward.1} parent=0 // pred_check
    _
  $region83: #{gat_link_autoencoder_forward.1} parent=0 // pred_check_branch
    %106 = sbr.rel (0) target = $region85
  $region84: #{gat_link_autoencoder_forward.1} parent=0 // pred_region
    _
  $region85: #{gat_link_autoencoder_forward.1} parent=0 // pred_fallthru
    _
  // Predicated region
  $region86: #{gat_link_autoencoder_forward.1} parent=0 // pred_check
    _
  $region87: #{gat_link_autoencoder_forward.1} parent=0 // pred_check_branch
    %108 = sbr.rel (0) target = $region89
  $region88: #{gat_link_autoencoder_forward.1} parent=0 // pred_region
    _
  $region89: #{gat_link_autoencoder_forward.1} parent=0 // pred_fallthru
    _
  // Predicated region
  $region90: #{gat_link_autoencoder_forward.1} parent=0 // pred_check
    _
  $region91: #{gat_link_autoencoder_forward.1} parent=0 // pred_check_branch
    %110 = sbr.rel (0) target = $region93
  $region92: #{gat_link_autoencoder_forward.1} parent=0 // pred_region
    _
  $region93: #{gat_link_autoencoder_forward.1} parent=0 // pred_fallthru
    _
  // Predicated region
  $region94: #{gat_link_autoencoder_forward.1} parent=0 // pred_check
    _
  $region95: #{gat_link_autoencoder_forward.1} parent=0 // pred_check_branch
    %112 = sbr.rel (0) target = $region97
  $region96: #{gat_link_autoencoder_forward.1} parent=0 // pred_region
    _
  $region97: #{gat_link_autoencoder_forward.1} parent=0 // pred_fallthru
    _
  // Predicated region
  $region98: #{gat_link_autoencoder_forward.1} parent=0 // pred_check
    _
  $region99: #{gat_link_autoencoder_forward.1} parent=0 // pred_check_branch
    %114 = sbr.rel (0) target = $region101
  $region100: #{gat_link_autoencoder_forward.1} parent=0 // pred_region
    _
  $region101: #{gat_link_autoencoder_forward.1} parent=0 // pred_fallthru
    _
  // Predicated region
  $region102: #{gat_link_autoencoder_forward.1} parent=0 // pred_check
    _
  $region103: #{gat_link_autoencoder_forward.1} parent=0 // pred_check_branch
    %116 = sbr.rel (0) target = $region105
  $region104: #{gat_link_autoencoder_forward.1} parent=0 // pred_region
    _
  $region105: #{gat_link_autoencoder_forward.1} parent=0 // pred_fallthru
    _
  // Predicated region
  $region106: #{gat_link_autoencoder_forward.1} parent=0 // pred_check
    _
  $region107: #{gat_link_autoencoder_forward.1} parent=0 // pred_check_branch
    %118 = sbr.rel (0) target = $region109
  $region108: #{gat_link_autoencoder_forward.1} parent=0 // pred_region
    _
  $region109: #{gat_link_autoencoder_forward.1} parent=0 // pred_fallthru
    _
  // Predicated region
  $region110: #{gat_link_autoencoder_forward.1} parent=0 // pred_check
    _
  $region111: #{gat_link_autoencoder_forward.1} parent=0 // pred_check_branch
    %120 = sbr.rel (0) target = $region113
  $region112: #{gat_link_autoencoder_forward.1} parent=0 // pred_region
    _
  $region113: #{gat_link_autoencoder_forward.1} parent=0 // pred_fallthru
    _
  %v121 = vld [vmem:[%s1] sm:$0xff]
  %v122 = vld [vmem:[%s1 + $0x8] sm:$0xff]
  %v123 = vld [vmem:[%s3] sm:$0xff]
  %v124 = vld [vmem:[%s3 + $0x8] sm:$0xff]
  %v125 = vsub.f32 %v123, 1.0
  %v126 = vsub.f32 %v124, 1.0
  %v127 = vmul.f32 %v125, 1e+30
  %v128 = vmul.f32 %v126, 1e+30
  %v129 = vld [vmem:[%s5] sm:$0xff]
  %v130 = vld [vmem:[%s7] sm:$0x1]
  %v131 = vld [vmem:[%s9] sm:$0x1]
  %v132 = vld [vmem:[%s11] sm:$0x1]
  %vm133 = vcmask 64512
  %v135 = vsel %vm133, %v121, 0
  %v138 = vsel %vm133, %v122, 0
  %140 = vmatprep.subr.mxu0 0.0
  %141 = vmatpush1.msra.mxu0 %v129
  %142 = vmatprep.subr.mxu0 0.0
  %143 = vmatpush1.msra.mxu0 0.0
  %144 = vmatprep.subr.mxu0 0.0
  %145 = vmatpush1.msra.mxu0 0.0
  %146 = vmatprep.subr.mxu0 0.0
  %147 = vmatpush1.msra.mxu0 0.0
  %148 = vmatprep.subr.mxu0 0.0
  %149 = vmatpush1.msra.mxu0 0.0
  %150 = vmatprep.subr.mxu0 0.0
  %151 = vmatpush1.msra.mxu0 0.0
  %152 = vmatprep.subr.mxu0 0.0
  %153 = vmatpush1.msra.mxu0 0.0
  %154 = vmatprep.subr.mxu0 0.0
  %155 = vmatpush1.msra.mxu0 0.0
  %156 = vmatprep.subr.mxu0 0.0
  %157 = vmatpush1.msra.mxu0 0.0
  %158 = vmatprep.subr.mxu0 0.0
  %159 = vmatpush1.msra.mxu0 0.0
  %160 = vmatprep.subr.mxu0 0.0
  %161 = vmatpush1.msra.mxu0 0.0
  %162 = vmatprep.subr.mxu0 0.0
  %163 = vmatpush1.msra.mxu0 0.0
  %164 = vmatprep.subr.mxu0 0.0
  %165 = vmatpush1.msra.mxu0 0.0
  %166 = vmatprep.subr.mxu0 0.0
  %167 = vmatpush1.msra.mxu0 0.0
  %168 = vmatprep.subr.mxu0 0.0
  %169 = vmatpush1.msra.mxu0 0.0
  %170 = vmatprep.subr.mxu0 0.0
  %171 = vmatpush1.msra.mxu0 0.0
  %172 = vmatprep.subr.mxu0 0.0
  %173 = vmatpush1.msra.mxu0 0.0
  %174 = vmatprep.subr.mxu0 0.0
  %175 = vmatpush1.msra.mxu0 0.0
  %176 = vmatprep.subr.mxu0 0.0
  %177 = vmatpush1.msra.mxu0 0.0
  %178 = vmatprep.subr.mxu0 0.0
  %179 = vmatpush1.msra.mxu0 0.0
  %180 = vmatprep.subr.mxu0 0.0
  %181 = vmatpush1.msra.mxu0 0.0
  %182 = vmatprep.subr.mxu0 0.0
  %183 = vmatpush1.msra.mxu0 0.0
  %184 = vmatprep.subr.mxu0 0.0
  %185 = vmatpush1.msra.mxu0 0.0
  %186 = vmatprep.subr.mxu0 0.0
  %187 = vmatpush1.msra.mxu0 0.0
  %188 = vmatprep.subr.mxu0 0.0
  %189 = vmatpush1.msra.mxu0 0.0
  %190 = vmatprep.subr.mxu0 0.0
  %191 = vmatpush1.msra.mxu0 0.0
  %192 = vmatprep.subr.mxu0 0.0
  %193 = vmatpush1.msra.mxu0 0.0
  %194 = vmatprep.subr.mxu0 0.0
  %195 = vmatpush1.msra.mxu0 0.0
  %196 = vmatprep.subr.mxu0 0.0
  %197 = vmatpush1.msra.mxu0 0.0
  %198 = vmatprep.subr.mxu0 0.0
  %199 = vmatpush1.msra.mxu0 0.0
  %200 = vmatprep.subr.mxu0 0.0
  %201 = vmatpush1.msra.mxu0 0.0
  %202 = vmatprep.subr.mxu0 0.0
  %203 = vmatpush1.msra.mxu0 0.0
  %204 = vmatprep.mubr.f32.mxu0 0.0
  %205 = vmatmul.mubr.f32.gmra.mrb[0].mxu0 %v135
  %v206 = vpop.f32.mrb[0].mxu0
  %v207 = vadd.f32 0.0, %v206
  %v208 = vpop.f32.mrb[0].mxu0
  %209 = vmatprep.mubr.f32.mxu0 0.0
  %210 = vmatmul.mubr.f32.gmra.mrb[0].mxu0 %v138
  %v211 = vpop.f32.mrb[0].mxu0
  %v212 = vadd.f32 0.0, %v211
  %v213 = vpop.f32.mrb[0].mxu0
  %214 = vdwg.mxu0
  %v215 = vld [vmem:[%s13] sm:$0xff]
  %v216 = vld [vmem:[%s13 + $0x8] sm:$0xff]
  %v217 = vld [vmem:[%s13 + $0x10] sm:$0xff]
  %v218 = vld [vmem:[%s13 + $0x18] sm:$0xff]
  %v220 = vlaneseq
  %v221 = vshrl.u32 %v220, 7
  %v222 = vsub.s32 0, %v221
  %v223 = vrot.slane %v131, %v222
  %v225 = vmul.f32 %v207, %v223
  %v226 = vmul.f32 %v212, %v223
  %vm227 = vcmask 261120
  %v229 = vsel %vm227, %v225, 0
  %v232 = vsel %vm227, %v226, 0
  %234 = vmatprep.subr.mxu0 0.0
  %235 = vmatpush1.msra.mxu0 %v215
  %236 = vmatprep.subr.mxu0 0.0
  %237 = vmatpush1.msra.mxu0 %v216
  %238 = vmatprep.subr.mxu0 0.0
  %239 = vmatpush1.msra.mxu0 %v217
  %240 = vmatprep.subr.mxu0 0.0
  %241 = vmatpush1.msra.mxu0 %v218
  %242 = vmatprep.subr.mxu0 0.0
  %243 = vmatpush1.msra.mxu0 0.0
  %244 = vmatprep.subr.mxu0 0.0
  %245 = vmatpush1.msra.mxu0 0.0
  %246 = vmatprep.subr.mxu0 0.0
  %247 = vmatpush1.msra.mxu0 0.0
  %248 = vmatprep.subr.mxu0 0.0
  %249 = vmatpush1.msra.mxu0 0.0
  %250 = vmatprep.subr.mxu0 0.0
  %251 = vmatpush1.msra.mxu0 0.0
  %252 = vmatprep.subr.mxu0 0.0
  %253 = vmatpush1.msra.mxu0 0.0
  %254 = vmatprep.subr.mxu0 0.0
  %255 = vmatpush1.msra.mxu0 0.0
  %256 = vmatprep.subr.mxu0 0.0
  %257 = vmatpush1.msra.mxu0 0.0
  %258 = vmatprep.subr.mxu0 0.0
  %259 = vmatpush1.msra.mxu0 0.0
  %260 = vmatprep.subr.mxu0 0.0
  %261 = vmatpush1.msra.mxu0 0.0
  %262 = vmatprep.subr.mxu0 0.0
  %263 = vmatpush1.msra.mxu0 0.0
  %264 = vmatprep.subr.mxu0 0.0
  %265 = vmatpush1.msra.mxu0 0.0
  %266 = vmatprep.subr.mxu0 0.0
  %267 = vmatpush1.msra.mxu0 0.0
  %268 = vmatprep.subr.mxu0 0.0
  %269 = vmatpush1.msra.mxu0 0.0
  %270 = vmatprep.subr.mxu0 0.0
  %271 = vmatpush1.msra.mxu0 0.0
  %272 = vmatprep.subr.mxu0 0.0
  %273 = vmatpush1.msra.mxu0 0.0
  %274 = vmatprep.subr.mxu0 0.0
  %275 = vmatpush1.msra.mxu0 0.0
  %276 = vmatprep.subr.mxu0 0.0
  %277 = vmatpush1.msra.mxu0 0.0
  %278 = vmatprep.subr.mxu0 0.0
  %279 = vmatpush1.msra.mxu0 0.0
  %280 = vmatprep.subr.mxu0 0.0
  %281 = vmatpush1.msra.mxu0 0.0
  %282 = vmatprep.subr.mxu0 0.0
  %283 = vmatpush1.msra.mxu0 0.0
  %284 = vmatprep.subr.mxu0 0.0
  %285 = vmatpush1.msra.mxu0 0.0
  %286 = vmatprep.subr.mxu0 0.0
  %287 = vmatpush1.msra.mxu0 0.0
  %288 = vmatprep.subr.mxu0 0.0
  %289 = vmatpush1.msra.mxu0 0.0
  %290 = vmatprep.subr.mxu0 0.0
  %291 = vmatpush1.msra.mxu0 0.0
  %292 = vmatprep.subr.mxu0 0.0
  %293 = vmatpush1.msra.mxu0 0.0
  %294 = vmatprep.subr.mxu0 0.0
  %295 = vmatpush1.msra.mxu0 0.0
  %296 = vmatprep.subr.mxu0 0.0
  %297 = vmatpush1.msra.mxu0 0.0
  %298 = vmatprep.mubr.f32.mxu0 0.0
  %299 = vmatmul.mubr.f32.gmra.mrb[0].mxu0 %v229
  %v300 = vpop.f32.mrb[0].mxu0
  %v301 = vadd.f32 0.0, %v300
  %v302 = vpop.f32.mrb[0].mxu0
  %303 = vmatprep.mubr.f32.mxu0 0.0
  %304 = vmatmul.mubr.f32.gmra.mrb[0].mxu0 %v232
  %v305 = vpop.f32.mrb[0].mxu0
  %v306 = vadd.f32 0.0, %v305
  %v307 = vpop.f32.mrb[0].mxu0
  %308 = vdwg.mxu0
  %v310 = vlaneseq
  %v311 = vshrl.u32 %v310, 7
  %v312 = vsub.s32 0, %v311
  %v313 = vrot.slane %v130, %v312
  %v315 = vmul.f32 %v207, %v313
  %v316 = vmul.f32 %v212, %v313
  %v318 = vsel %vm227, %v315, 0
  %v321 = vsel %vm227, %v316, 0
  %323 = vmatprep.subr.mxu0 0.0
  %324 = vmatpush1.msra.mxu0 %v215
  %325 = vmatprep.subr.mxu0 0.0
  %326 = vmatpush1.msra.mxu0 %v216
  %327 = vmatprep.subr.mxu0 0.0
  %328 = vmatpush1.msra.mxu0 %v217
  %329 = vmatprep.subr.mxu0 0.0
  %330 = vmatpush1.msra.mxu0 %v218
  %331 = vmatprep.subr.mxu0 0.0
  %332 = vmatpush1.msra.mxu0 0.0
  %333 = vmatprep.subr.mxu0 0.0
  %334 = vmatpush1.msra.mxu0 0.0
  %335 = vmatprep.subr.mxu0 0.0
  %336 = vmatpush1.msra.mxu0 0.0
  %337 = vmatprep.subr.mxu0 0.0
  %338 = vmatpush1.msra.mxu0 0.0
  %339 = vmatprep.subr.mxu0 0.0
  %340 = vmatpush1.msra.mxu0 0.0
  %341 = vmatprep.subr.mxu0 0.0
  %342 = vmatpush1.msra.mxu0 0.0
  %343 = vmatprep.subr.mxu0 0.0
  %344 = vmatpush1.msra.mxu0 0.0
  %345 = vmatprep.subr.mxu0 0.0
  %346 = vmatpush1.msra.mxu0 0.0
  %347 = vmatprep.subr.mxu0 0.0
  %348 = vmatpush1.msra.mxu0 0.0
  %349 = vmatprep.subr.mxu0 0.0
  %350 = vmatpush1.msra.mxu0 0.0
  %351 = vmatprep.subr.mxu0 0.0
  %352 = vmatpush1.msra.mxu0 0.0
  %353 = vmatprep.subr.mxu0 0.0
  %354 = vmatpush1.msra.mxu0 0.0
  %355 = vmatprep.subr.mxu0 0.0
  %356 = vmatpush1.msra.mxu0 0.0
  %357 = vmatprep.subr.mxu0 0.0
  %358 = vmatpush1.msra.mxu0 0.0
  %359 = vmatprep.subr.mxu0 0.0
  %360 = vmatpush1.msra.mxu0 0.0
  %361 = vmatprep.subr.mxu0 0.0
  %362 = vmatpush1.msra.mxu0 0.0
  %363 = vmatprep.subr.mxu0 0.0
  %364 = vmatpush1.msra.mxu0 0.0
  %365 = vmatprep.subr.mxu0 0.0
  %366 = vmatpush1.msra.mxu0 0.0
  %367 = vmatprep.subr.mxu0 0.0
  %368 = vmatpush1.msra.mxu0 0.0
  %369 = vmatprep.subr.mxu0 0.0
  %370 = vmatpush1.msra.mxu0 0.0
  %371 = vmatprep.subr.mxu0 0.0
  %372 = vmatpush1.msra.mxu0 0.0
  %373 = vmatprep.subr.mxu0 0.0
  %374 = vmatpush1.msra.mxu0 0.0
  %375 = vmatprep.subr.mxu0 0.0
  %376 = vmatpush1.msra.mxu0 0.0
  %377 = vmatprep.subr.mxu0 0.0
  %378 = vmatpush1.msra.mxu0 0.0
  %379 = vmatprep.subr.mxu0 0.0
  %380 = vmatpush1.msra.mxu0 0.0
  %381 = vmatprep.subr.mxu0 0.0
  %382 = vmatpush1.msra.mxu0 0.0
  %383 = vmatprep.subr.mxu0 0.0
  %384 = vmatpush1.msra.mxu0 0.0
  %385 = vmatprep.subr.mxu0 0.0
  %386 = vmatpush1.msra.mxu0 0.0
  %387 = vmatprep.mubr.f32.mxu0 0.0
  %388 = vmatmul.mubr.f32.gmra.mrb[0].mxu0 %v318
  %v389 = vpop.f32.mrb[0].mxu0
  %v390 = vadd.f32 0.0, %v389
  %v391 = vpop.f32.mrb[0].mxu0
  %392 = vmatprep.mubr.f32.mxu0 0.0
  %393 = vmatmul.mubr.f32.gmra.mrb[0].mxu0 %v321
  %v394 = vpop.f32.mrb[0].mxu0
  %v395 = vadd.f32 0.0, %v394
  %v396 = vpop.f32.mrb[0].mxu0
  %397 = vdwg.mxu0
  %398 = vxpose.xlu0.b32.start [1/16] %v390, 128
  %399 = vxpose.xlu0.b32.cont [2/16] %v395, 128
  %400 = vxpose.xlu0.b32.cont [3/16] 0.0, 128
  %401 = vxpose.xlu0.b32.cont [4/16] 0.0, 128
  %402 = vxpose.xlu0.b32.cont [5/16] 0.0, 128
  %403 = vxpose.xlu0.b32.cont [6/16] 0.0, 128
  %404 = vxpose.xlu0.b32.cont [7/16] 0.0, 128
  %405 = vxpose.xlu0.b32.cont [8/16] 0.0, 128
  %406 = vxpose.xlu0.b32.cont [9/16] 0.0, 128
  %407 = vxpose.xlu0.b32.cont [10/16] 0.0, 128
  %408 = vxpose.xlu0.b32.cont [11/16] 0.0, 128
  %409 = vxpose.xlu0.b32.cont [12/16] 0.0, 128
  %410 = vxpose.xlu0.b32.cont [13/16] 0.0, 128
  %411 = vxpose.xlu0.b32.cont [14/16] 0.0, 128
  %412 = vxpose.xlu0.b32.cont [15/16] 0.0, 128
  %413 = vxpose.xlu0.b32.end [16/16] 0.0, 128
  %v414 = vpop.trf.xlu0
  %v415 = vpop.trf.xlu0
  %v416 = vpop.trf.xlu0
  %v417 = vpop.trf.xlu0
  %v418 = vpop.trf.xlu0
  %v419 = vpop.trf.xlu0
  %v420 = vpop.trf.xlu0
  %v421 = vpop.trf.xlu0
  %v422 = vpop.trf.xlu0
  %v423 = vpop.trf.xlu0
  %v424 = vpop.trf.xlu0
  %v425 = vpop.trf.xlu0
  %v426 = vpop.trf.xlu0
  %v427 = vpop.trf.xlu0
  %v428 = vpop.trf.xlu0
  %v429 = vpop.trf.xlu0
  %431 = vset.pattern.permute.xlu0 0
  %432 = vperm.xlu0 %431, %v301
  %v433 = vpop.permute.xlu0 %432
  %436 = vset.pattern.permute.xlu0 0
  %437 = vperm.xlu0 %436, %v306
  %v438 = vpop.permute.xlu0 %437
  %v440 = vlaneseq
  %v441 = vshrl.u32 %v440, 7
  %v442 = vsub.s32 0, %v441
  %v443 = vrot.slane %v414, %v442
  %v444 = vadd.f32 %v433, %v443
  %v445 = vadd.f32 %v438, %v443
  %vm446 = vcmp.ge.f32.partialorder %v444, 0.0
  %vm447 = vcmp.ge.f32.partialorder %v445, 0.0
  %v448 = vmul.f32 %v444, 0.2
  %v449 = vmul.f32 %v445, 0.2
  %v450 = vsel %vm446, %v444, %v448
  %v451 = vsel %vm447, %v445, %v449
  %v452 = vadd.f32 %v450, %v127
  %v453 = vadd.f32 %v451, %v128
  %vm454 = vcmask 130048
  %v455 = vsel %vm454, %v452, -inf
  %456 = vmax.xlane.f32.xlu0 %v455
  %v457 = vpop.xlane.xlu0 %456
  %v458 = vsel %vm454, %v453, -inf
  %459 = vmax.xlane.f32.xlu0 %v458
  %v460 = vpop.xlane.xlu0 %459
  %v461 = vsub.f32 %v452, %v457
  %v462 = vsub.f32 %v453, %v460
  %v463 = vmul.f32 %v461, 1.442695
  %v464 = vpow.pop %v463
  %v465 = vmul.f32 %v462, 1.442695
  %v466 = vpow.pop %v465
  %v467 = vsel %vm454, %v464, 0.0
  %468 = vadd.xlane.f32.xlu0 %v467
  %v469 = vpop.xlane.xlu0 %468
  %v470 = vsel %vm454, %v466, 0.0
  %471 = vadd.xlane.f32.xlu0 %v470
  %v472 = vpop.xlane.xlu0 %471
  %473 = vset.pattern.permute.xlu0 1
  %474 = vperm.xlu0 %473, %v301
  %v475 = vpop.permute.xlu0 %474
  %477 = vset.pattern.permute.xlu0 1
  %478 = vperm.xlu0 %477, %v306
  %v479 = vpop.permute.xlu0 %478
  %v481 = vlaneseq
  %v482 = vshrl.u32 %v481, 7
  %v483 = vsub.s32 1, %v482
  %v484 = vrot.slane %v414, %v483
  %v485 = vadd.f32 %v475, %v484
  %v486 = vadd.f32 %v479, %v484
  %vm487 = vcmp.ge.f32.partialorder %v485, 0.0
  %vm488 = vcmp.ge.f32.partialorder %v486, 0.0
  %v489 = vmul.f32 %v485, 0.2
  %v490 = vmul.f32 %v486, 0.2
  %v491 = vsel %vm487, %v485, %v489
  %v492 = vsel %vm488, %v486, %v490
  %v493 = vadd.f32 %v491, %v127
  %v494 = vadd.f32 %v492, %v128
  %v495 = vsel %vm454, %v493, -inf
  %496 = vmax.xlane.f32.xlu0 %v495
  %v497 = vpop.xlane.xlu0 %496
  %v498 = vsel %vm454, %v494, -inf
  %499 = vmax.xlane.f32.xlu0 %v498
  %v500 = vpop.xlane.xlu0 %499
  %v501 = vsub.f32 %v493, %v497
  %v502 = vsub.f32 %v494, %v500
  %v503 = vmul.f32 %v501, 1.442695
  %v504 = vpow.pop %v503
  %v505 = vmul.f32 %v502, 1.442695
  %v506 = vpow.pop %v505
  %v507 = vsel %vm454, %v504, 0.0
  %508 = vadd.xlane.f32.xlu0 %v507
  %v509 = vpop.xlane.xlu0 %508
  %v510 = vsel %vm454, %v506, 0.0
  %511 = vadd.xlane.f32.xlu0 %v510
  %v512 = vpop.xlane.xlu0 %511
  %513 = vset.pattern.permute.xlu0 2
  %514 = vperm.xlu0 %513, %v301
  %v515 = vpop.permute.xlu0 %514
  %517 = vset.pattern.permute.xlu0 2
  %518 = vperm.xlu0 %517, %v306
  %v519 = vpop.permute.xlu0 %518
  %v521 = vlaneseq
  %v522 = vshrl.u32 %v521, 7
  %v523 = vsub.s32 2, %v522
  %v524 = vrot.slane %v414, %v523
  %v525 = vadd.f32 %v515, %v524
  %v526 = vadd.f32 %v519, %v524
  %vm527 = vcmp.ge.f32.partialorder %v525, 0.0
  %vm528 = vcmp.ge.f32.partialorder %v526, 0.0
  %v529 = vmul.f32 %v525, 0.2
  %v530 = vmul.f32 %v526, 0.2
  %v531 = vsel %vm527, %v525, %v529
  %v532 = vsel %vm528, %v526, %v530
  %v533 = vadd.f32 %v531, %v127
  %v534 = vadd.f32 %v532, %v128
  %v535 = vsel %vm454, %v533, -inf
  %536 = vmax.xlane.f32.xlu0 %v535
  %v537 = vpop.xlane.xlu0 %536
  %v538 = vsel %vm454, %v534, -inf
  %539 = vmax.xlane.f32.xlu0 %v538
  %v540 = vpop.xlane.xlu0 %539
  %v541 = vsub.f32 %v533, %v537
  %v542 = vsub.f32 %v534, %v540
  %v543 = vmul.f32 %v541, 1.442695
  %v544 = vpow.pop %v543
  %v545 = vmul.f32 %v542, 1.442695
  %v546 = vpow.pop %v545
  %v547 = vsel %vm454, %v544, 0.0
  %548 = vadd.xlane.f32.xlu0 %v547
  %v549 = vpop.xlane.xlu0 %548
  %v550 = vsel %vm454, %v546, 0.0
  %551 = vadd.xlane.f32.xlu0 %v550
  %v552 = vpop.xlane.xlu0 %551
  %553 = vset.pattern.permute.xlu0 3
  %554 = vperm.xlu0 %553, %v301
  %v555 = vpop.permute.xlu0 %554
  %557 = vset.pattern.permute.xlu0 3
  %558 = vperm.xlu0 %557, %v306
  %v559 = vpop.permute.xlu0 %558
  %v561 = vlaneseq
  %v562 = vshrl.u32 %v561, 7
  %v563 = vsub.s32 3, %v562
  %v564 = vrot.slane %v414, %v563
  %v565 = vadd.f32 %v555, %v564
  %v566 = vadd.f32 %v559, %v564
  %vm567 = vcmp.ge.f32.partialorder %v565, 0.0
  %vm568 = vcmp.ge.f32.partialorder %v566, 0.0
  %v569 = vmul.f32 %v565, 0.2
  %v570 = vmul.f32 %v566, 0.2
  %v571 = vsel %vm567, %v565, %v569
  %v572 = vsel %vm568, %v566, %v570
  %v573 = vadd.f32 %v571, %v127
  %v574 = vadd.f32 %v572, %v128
  %v575 = vsel %vm454, %v573, -inf
  %576 = vmax.xlane.f32.xlu0 %v575
  %v577 = vpop.xlane.xlu0 %576
  %v578 = vsel %vm454, %v574, -inf
  %579 = vmax.xlane.f32.xlu0 %v578
  %v580 = vpop.xlane.xlu0 %579
  %v581 = vsub.f32 %v573, %v577
  %v582 = vsub.f32 %v574, %v580
  %v583 = vmul.f32 %v581, 1.442695
  %v584 = vpow.pop %v583
  %v585 = vmul.f32 %v582, 1.442695
  %v586 = vpow.pop %v585
  %v587 = vsel %vm454, %v584, 0.0
  %588 = vadd.xlane.f32.xlu0 %v587
  %v589 = vpop.xlane.xlu0 %588
  %v590 = vsel %vm454, %v586, 0.0
  %591 = vadd.xlane.f32.xlu0 %v590
  %v592 = vpop.xlane.xlu0 %591
  %v593 = vld [vmem:[%s15] sm:$0xf]
  %596 = vrot.lane.b32.xlu0 %v504, 16
  %v597 = vpop.permute.xlu0 %596
  %598 = vrot.lane.b32.xlu0 %v506, 16
  %v599 = vpop.permute.xlu0 %598
  %604 = vrot.lane.b32.xlu0 %v544, 32
  %v605 = vpop.permute.xlu0 %604
  %606 = vrot.lane.b32.xlu0 %v546, 32
  %v607 = vpop.permute.xlu0 %606
  %612 = vrot.lane.b32.xlu0 %v584, 48
  %v613 = vpop.permute.xlu0 %612
  %614 = vrot.lane.b32.xlu0 %v586, 48
  %v615 = vpop.permute.xlu0 %614
  %v618 = vsel %vm454, %v464, %v597
  %v619 = vsel %vm454, %v466, %v599
  %v620 = vsel %vm227, %v618, %v605
  %v621 = vsel %vm227, %v619, %v607
  %vm622 = vcmask 392192
  %v623 = vsel %vm622, %v620, %v613
  %v624 = vsel %vm622, %v621, %v615
  %v625 = vlaneseq
  %v626 = vshrl.u32 %v625, 7
  %v627 = vsub.s32 0, %v626
  %v628 = vrot.slane %v593, %v627
  %v629 = vmul.f32 %v207, %v628
  %v630 = vmul.f32 %v212, %v628
  %v631 = vlaneseq
  %v632 = vshrl.u32 %v631, 7
  %v633 = vsub.s32 1, %v632
  %v634 = vrot.slane %v593, %v633
  %v635 = vmul.f32 %v207, %v634
  %v636 = vmul.f32 %v212, %v634
  %v637 = vlaneseq
  %v638 = vshrl.u32 %v637, 7
  %v639 = vsub.s32 2, %v638
  %v640 = vrot.slane %v593, %v639
  %v641 = vmul.f32 %v207, %v640
  %v642 = vmul.f32 %v212, %v640
  %v643 = vlaneseq
  %v644 = vshrl.u32 %v643, 7
  %v645 = vsub.s32 3, %v644
  %v646 = vrot.slane %v593, %v645
  %v647 = vmul.f32 %v207, %v646
  %v648 = vmul.f32 %v212, %v646
  %v649 = vsel %vm133, %v469, %v509
  %v650 = vsel %vm133, %v472, %v512
  %v651 = vsel %vm454, %v649, %v549
  %v652 = vsel %vm454, %v650, %v552
  %vm653 = vcmask 195584
  %v654 = vsel %vm653, %v651, %v589
  %v655 = vsel %vm653, %v652, %v592
  %vm656 = vcmask 523264
  %v658 = vsel %vm656, %v623, 0
  %v661 = vsel %vm656, %v624, 0
  %663 = vmatprep.subr.mxu0 0.0
  %664 = vmatpush1.msra.mxu0 %v629
  %665 = vmatprep.subr.mxu0 0.0
  %666 = vmatpush1.msra.mxu0 %v630
  %667 = vmatprep.subr.mxu0 0.0
  %668 = vmatpush1.msra.mxu0 %v635
  %669 = vmatprep.subr.mxu0 0.0
  %670 = vmatpush1.msra.mxu0 %v636
  %671 = vmatprep.subr.mxu0 0.0
  %672 = vmatpush1.msra.mxu0 %v641
  %673 = vmatprep.subr.mxu0 0.0
  %674 = vmatpush1.msra.mxu0 %v642
  %675 = vmatprep.subr.mxu0 0.0
  %676 = vmatpush1.msra.mxu0 %v647
  %677 = vmatprep.subr.mxu0 0.0
  %678 = vmatpush1.msra.mxu0 %v648
  %679 = vmatprep.subr.mxu0 0.0
  %680 = vmatpush1.msra.mxu0 0.0
  %681 = vmatprep.subr.mxu0 0.0
  %682 = vmatpush1.msra.mxu0 0.0
  %683 = vmatprep.subr.mxu0 0.0
  %684 = vmatpush1.msra.mxu0 0.0
  %685 = vmatprep.subr.mxu0 0.0
  %686 = vmatpush1.msra.mxu0 0.0
  %687 = vmatprep.subr.mxu0 0.0
  %688 = vmatpush1.msra.mxu0 0.0
  %689 = vmatprep.subr.mxu0 0.0
  %690 = vmatpush1.msra.mxu0 0.0
  %691 = vmatprep.subr.mxu0 0.0
  %692 = vmatpush1.msra.mxu0 0.0
  %693 = vmatprep.subr.mxu0 0.0
  %694 = vmatpush1.msra.mxu0 0.0
  %695 = vmatprep.subr.mxu0 0.0
  %696 = vmatpush1.msra.mxu0 0.0
  %697 = vmatprep.subr.mxu0 0.0
  %698 = vmatpush1.msra.mxu0 0.0
  %699 = vmatprep.subr.mxu0 0.0
  %700 = vmatpush1.msra.mxu0 0.0
  %701 = vmatprep.subr.mxu0 0.0
  %702 = vmatpush1.msra.mxu0 0.0
  %703 = vmatprep.subr.mxu0 0.0
  %704 = vmatpush1.msra.mxu0 0.0
  %705 = vmatprep.subr.mxu0 0.0
  %706 = vmatpush1.msra.mxu0 0.0
  %707 = vmatprep.subr.mxu0 0.0
  %708 = vmatpush1.msra.mxu0 0.0
  %709 = vmatprep.subr.mxu0 0.0
  %710 = vmatpush1.msra.mxu0 0.0
  %711 = vmatprep.subr.mxu0 0.0
  %712 = vmatpush1.msra.mxu0 0.0
  %713 = vmatprep.subr.mxu0 0.0
  %714 = vmatpush1.msra.mxu0 0.0
  %715 = vmatprep.subr.mxu0 0.0
  %716 = vmatpush1.msra.mxu0 0.0
  %717 = vmatprep.subr.mxu0 0.0
  %718 = vmatpush1.msra.mxu0 0.0
  %719 = vmatprep.subr.mxu0 0.0
  %720 = vmatpush1.msra.mxu0 0.0
  %721 = vmatprep.subr.mxu0 0.0
  %722 = vmatpush1.msra.mxu0 0.0
  %723 = vmatprep.subr.mxu0 0.0
  %724 = vmatpush1.msra.mxu0 0.0
  %725 = vmatprep.subr.mxu0 0.0
  %726 = vmatpush1.msra.mxu0 0.0
  %727 = vmatprep.mubr.f32.mxu0 0.0
  %728 = vmatmul.mubr.f32.gmra.mrb[0].mxu0 %v658
  %v729 = vpop.f32.mrb[0].mxu0
  %v730 = vadd.f32 0.0, %v729
  %v731 = vpop.f32.mrb[0].mxu0
  %732 = vmatprep.mubr.f32.mxu0 0.0
  %733 = vmatmul.mubr.f32.gmra.mrb[0].mxu0 %v661
  %v734 = vpop.f32.mrb[0].mxu0
  %v735 = vadd.f32 0.0, %v734
  %v736 = vpop.f32.mrb[0].mxu0
  %737 = vdwg.mxu0
  %v738 = vrcp.pop %v654
  %v739 = vmul.f32 %v730, %v738
  %v740 = vrcp.pop %v655
  %v741 = vmul.f32 %v735, %v740
  %v743 = vlaneseq
  %v744 = vshrl.u32 %v743, 7
  %v745 = vsub.s32 0, %v744
  %v746 = vrot.slane %v132, %v745
  %v748 = vadd.f32 %v739, %v746
  %v749 = vadd.f32 %v741, %v746
  %vm750 = vcmp.ge.f32.partialorder %v748, 0.0
  %vm751 = vcmp.ge.f32.partialorder %v749, 0.0
  %v752 = vmul.f32 %v748, 0.01
  %v753 = vmul.f32 %v749, 0.01
  %v754 = vsel %vm750, %v748, %v752
  %v755 = vsel %vm751, %v749, %v753
  %v756 = vld [vmem:[%s17] sm:$0xff]
  %v757 = vld [vmem:[%s17 + $0x8] sm:$0xff]
  %v758 = vld [vmem:[%s17 + $0x10] sm:$0xff]
  %v759 = vld [vmem:[%s17 + $0x18] sm:$0xff]
  %v760 = vld [vmem:[%s19] sm:$0x1]
  %v761 = vld [vmem:[%s21] sm:$0x1]
  %v762 = vld [vmem:[%s23] sm:$0x1]
  %v764 = vsel %vm227, %v754, 0
  %v767 = vsel %vm227, %v755, 0
  %769 = vmatprep.subr.mxu0 0.0
  %770 = vmatpush1.msra.mxu0 %v756
  %771 = vmatprep.subr.mxu0 0.0
  %772 = vmatpush1.msra.mxu0 %v757
  %773 = vmatprep.subr.mxu0 0.0
  %774 = vmatpush1.msra.mxu0 %v758
  %775 = vmatprep.subr.mxu0 0.0
  %776 = vmatpush1.msra.mxu0 %v759
  %777 = vmatprep.subr.mxu0 0.0
  %778 = vmatpush1.msra.mxu0 0.0
  %779 = vmatprep.subr.mxu0 0.0
  %780 = vmatpush1.msra.mxu0 0.0
  %781 = vmatprep.subr.mxu0 0.0
  %782 = vmatpush1.msra.mxu0 0.0
  %783 = vmatprep.subr.mxu0 0.0
  %784 = vmatpush1.msra.mxu0 0.0
  %785 = vmatprep.subr.mxu0 0.0
  %786 = vmatpush1.msra.mxu0 0.0
  %787 = vmatprep.subr.mxu0 0.0
  %788 = vmatpush1.msra.mxu0 0.0
  %789 = vmatprep.subr.mxu0 0.0
  %790 = vmatpush1.msra.mxu0 0.0
  %791 = vmatprep.subr.mxu0 0.0
  %792 = vmatpush1.msra.mxu0 0.0
  %793 = vmatprep.subr.mxu0 0.0
  %794 = vmatpush1.msra.mxu0 0.0
  %795 = vmatprep.subr.mxu0 0.0
  %796 = vmatpush1.msra.mxu0 0.0
  %797 = vmatprep.subr.mxu0 0.0
  %798 = vmatpush1.msra.mxu0 0.0
  %799 = vmatprep.subr.mxu0 0.0
  %800 = vmatpush1.msra.mxu0 0.0
  %801 = vmatprep.subr.mxu0 0.0
  %802 = vmatpush1.msra.mxu0 0.0
  %803 = vmatprep.subr.mxu0 0.0
  %804 = vmatpush1.msra.mxu0 0.0
  %805 = vmatprep.subr.mxu0 0.0
  %806 = vmatpush1.msra.mxu0 0.0
  %807 = vmatprep.subr.mxu0 0.0
  %808 = vmatpush1.msra.mxu0 0.0
  %809 = vmatprep.subr.mxu0 0.0
  %810 = vmatpush1.msra.mxu0 0.0
  %811 = vmatprep.subr.mxu0 0.0
  %812 = vmatpush1.msra.mxu0 0.0
  %813 = vmatprep.subr.mxu0 0.0
  %814 = vmatpush1.msra.mxu0 0.0
  %815 = vmatprep.subr.mxu0 0.0
  %816 = vmatpush1.msra.mxu0 0.0
  %817 = vmatprep.subr.mxu0 0.0
  %818 = vmatpush1.msra.mxu0 0.0
  %819 = vmatprep.subr.mxu0 0.0
  %820 = vmatpush1.msra.mxu0 0.0
  %821 = vmatprep.subr.mxu0 0.0
  %822 = vmatpush1.msra.mxu0 0.0
  %823 = vmatprep.subr.mxu0 0.0
  %824 = vmatpush1.msra.mxu0 0.0
  %825 = vmatprep.subr.mxu0 0.0
  %826 = vmatpush1.msra.mxu0 0.0
  %827 = vmatprep.subr.mxu0 0.0
  %828 = vmatpush1.msra.mxu0 0.0
  %829 = vmatprep.subr.mxu0 0.0
  %830 = vmatpush1.msra.mxu0 0.0
  %831 = vmatprep.subr.mxu0 0.0
  %832 = vmatpush1.msra.mxu0 0.0
  %833 = vmatprep.mubr.f32.mxu0 0.0
  %834 = vmatmul.mubr.f32.gmra.mrb[0].mxu0 %v764
  %v835 = vpop.f32.mrb[0].mxu0
  %v836 = vadd.f32 0.0, %v835
  %v837 = vpop.f32.mrb[0].mxu0
  %838 = vmatprep.mubr.f32.mxu0 0.0
  %839 = vmatmul.mubr.f32.gmra.mrb[0].mxu0 %v767
  %v840 = vpop.f32.mrb[0].mxu0
  %v841 = vadd.f32 0.0, %v840
  %v842 = vpop.f32.mrb[0].mxu0
  %843 = vdwg.mxu0
  %v844 = vld [vmem:[%s25] sm:$0xff]
  %v845 = vld [vmem:[%s25 + $0x8] sm:$0xff]
  %v846 = vld [vmem:[%s25 + $0x10] sm:$0xff]
  %v847 = vld [vmem:[%s25 + $0x18] sm:$0xff]
  %v849 = vlaneseq
  %v850 = vshrl.u32 %v849, 7
  %v851 = vsub.s32 0, %v850
  %v852 = vrot.slane %v761, %v851
  %v854 = vmul.f32 %v836, %v852
  %v855 = vmul.f32 %v841, %v852
  %v857 = vsel %vm227, %v854, 0
  %v860 = vsel %vm227, %v855, 0
  %862 = vmatprep.subr.mxu0 0.0
  %863 = vmatpush1.msra.mxu0 %v844
  %864 = vmatprep.subr.mxu0 0.0
  %865 = vmatpush1.msra.mxu0 %v845
  %866 = vmatprep.subr.mxu0 0.0
  %867 = vmatpush1.msra.mxu0 %v846
  %868 = vmatprep.subr.mxu0 0.0
  %869 = vmatpush1.msra.mxu0 %v847
  %870 = vmatprep.subr.mxu0 0.0
  %871 = vmatpush1.msra.mxu0 0.0
  %872 = vmatprep.subr.mxu0 0.0
  %873 = vmatpush1.msra.mxu0 0.0
  %874 = vmatprep.subr.mxu0 0.0
  %875 = vmatpush1.msra.mxu0 0.0
  %876 = vmatprep.subr.mxu0 0.0
  %877 = vmatpush1.msra.mxu0 0.0
  %878 = vmatprep.subr.mxu0 0.0
  %879 = vmatpush1.msra.mxu0 0.0
  %880 = vmatprep.subr.mxu0 0.0
  %881 = vmatpush1.msra.mxu0 0.0
  %882 = vmatprep.subr.mxu0 0.0
  %883 = vmatpush1.msra.mxu0 0.0
  %884 = vmatprep.subr.mxu0 0.0
  %885 = vmatpush1.msra.mxu0 0.0
  %886 = vmatprep.subr.mxu0 0.0
  %887 = vmatpush1.msra.mxu0 0.0
  %888 = vmatprep.subr.mxu0 0.0
  %889 = vmatpush1.msra.mxu0 0.0
  %890 = vmatprep.subr.mxu0 0.0
  %891 = vmatpush1.msra.mxu0 0.0
  %892 = vmatprep.subr.mxu0 0.0
  %893 = vmatpush1.msra.mxu0 0.0
  %894 = vmatprep.subr.mxu0 0.0
  %895 = vmatpush1.msra.mxu0 0.0
  %896 = vmatprep.subr.mxu0 0.0
  %897 = vmatpush1.msra.mxu0 0.0
  %898 = vmatprep.subr.mxu0 0.0
  %899 = vmatpush1.msra.mxu0 0.0
  %900 = vmatprep.subr.mxu0 0.0
  %901 = vmatpush1.msra.mxu0 0.0
  %902 = vmatprep.subr.mxu0 0.0
  %903 = vmatpush1.msra.mxu0 0.0
  %904 = vmatprep.subr.mxu0 0.0
  %905 = vmatpush1.msra.mxu0 0.0
  %906 = vmatprep.subr.mxu0 0.0
  %907 = vmatpush1.msra.mxu0 0.0
  %908 = vmatprep.subr.mxu0 0.0
  %909 = vmatpush1.msra.mxu0 0.0
  %910 = vmatprep.subr.mxu0 0.0
  %911 = vmatpush1.msra.mxu0 0.0
  %912 = vmatprep.subr.mxu0 0.0
  %913 = vmatpush1.msra.mxu0 0.0
  %914 = vmatprep.subr.mxu0 0.0
  %915 = vmatpush1.msra.mxu0 0.0
  %916 = vmatprep.subr.mxu0 0.0
  %917 = vmatpush1.msra.mxu0 0.0
  %918 = vmatprep.subr.mxu0 0.0
  %919 = vmatpush1.msra.mxu0 0.0
  %920 = vmatprep.subr.mxu0 0.0
  %921 = vmatpush1.msra.mxu0 0.0
  %922 = vmatprep.subr.mxu0 0.0
  %923 = vmatpush1.msra.mxu0 0.0
  %924 = vmatprep.subr.mxu0 0.0
  %925 = vmatpush1.msra.mxu0 0.0
  %926 = vmatprep.mubr.f32.mxu0 0.0
  %927 = vmatmul.mubr.f32.gmra.mrb[0].mxu0 %v857
  %v928 = vpop.f32.mrb[0].mxu0
  %v929 = vadd.f32 0.0, %v928
  %v930 = vpop.f32.mrb[0].mxu0
  %931 = vmatprep.mubr.f32.mxu0 0.0
  %932 = vmatmul.mubr.f32.gmra.mrb[0].mxu0 %v860
  %v933 = vpop.f32.mrb[0].mxu0
  %v934 = vadd.f32 0.0, %v933
  %v935 = vpop.f32.mrb[0].mxu0
  %936 = vdwg.mxu0
  %v938 = vlaneseq
  %v939 = vshrl.u32 %v938, 7
  %v940 = vsub.s32 0, %v939
  %v941 = vrot.slane %v760, %v940
  %v943 = vmul.f32 %v836, %v941
  %v944 = vmul.f32 %v841, %v941
  %v946 = vsel %vm227, %v943, 0
  %v949 = vsel %vm227, %v944, 0
  %951 = vmatprep.subr.mxu0 0.0
  %952 = vmatpush1.msra.mxu0 %v844
  %953 = vmatprep.subr.mxu0 0.0
  %954 = vmatpush1.msra.mxu0 %v845
  %955 = vmatprep.subr.mxu0 0.0
  %956 = vmatpush1.msra.mxu0 %v846
  %957 = vmatprep.subr.mxu0 0.0
  %958 = vmatpush1.msra.mxu0 %v847
  %959 = vmatprep.subr.mxu0 0.0
  %960 = vmatpush1.msra.mxu0 0.0
  %961 = vmatprep.subr.mxu0 0.0
  %962 = vmatpush1.msra.mxu0 0.0
  %963 = vmatprep.subr.mxu0 0.0
  %964 = vmatpush1.msra.mxu0 0.0
  %965 = vmatprep.subr.mxu0 0.0
  %966 = vmatpush1.msra.mxu0 0.0
  %967 = vmatprep.subr.mxu0 0.0
  %968 = vmatpush1.msra.mxu0 0.0
  %969 = vmatprep.subr.mxu0 0.0
  %970 = vmatpush1.msra.mxu0 0.0
  %971 = vmatprep.subr.mxu0 0.0
  %972 = vmatpush1.msra.mxu0 0.0
  %973 = vmatprep.subr.mxu0 0.0
  %974 = vmatpush1.msra.mxu0 0.0
  %975 = vmatprep.subr.mxu0 0.0
  %976 = vmatpush1.msra.mxu0 0.0
  %977 = vmatprep.subr.mxu0 0.0
  %978 = vmatpush1.msra.mxu0 0.0
  %979 = vmatprep.subr.mxu0 0.0
  %980 = vmatpush1.msra.mxu0 0.0
  %981 = vmatprep.subr.mxu0 0.0
  %982 = vmatpush1.msra.mxu0 0.0
  %983 = vmatprep.subr.mxu0 0.0
  %984 = vmatpush1.msra.mxu0 0.0
  %985 = vmatprep.subr.mxu0 0.0
  %986 = vmatpush1.msra.mxu0 0.0
  %987 = vmatprep.subr.mxu0 0.0
  %988 = vmatpush1.msra.mxu0 0.0
  %989 = vmatprep.subr.mxu0 0.0
  %990 = vmatpush1.msra.mxu0 0.0
  %991 = vmatprep.subr.mxu0 0.0
  %992 = vmatpush1.msra.mxu0 0.0
  %993 = vmatprep.subr.mxu0 0.0
  %994 = vmatpush1.msra.mxu0 0.0
  %995 = vmatprep.subr.mxu0 0.0
  %996 = vmatpush1.msra.mxu0 0.0
  %997 = vmatprep.subr.mxu0 0.0
  %998 = vmatpush1.msra.mxu0 0.0
  %999 = vmatprep.subr.mxu0 0.0
  %1000 = vmatpush1.msra.mxu0 0.0
  %1001 = vmatprep.subr.mxu0 0.0
  %1002 = vmatpush1.msra.mxu0 0.0
  %1003 = vmatprep.subr.mxu0 0.0
  %1004 = vmatpush1.msra.mxu0 0.0
  %1005 = vmatprep.subr.mxu0 0.0
  %1006 = vmatpush1.msra.mxu0 0.0
  %1007 = vmatprep.subr.mxu0 0.0
  %1008 = vmatpush1.msra.mxu0 0.0
  %1009 = vmatprep.subr.mxu0 0.0
  %1010 = vmatpush1.msra.mxu0 0.0
  %1011 = vmatprep.subr.mxu0 0.0
  %1012 = vmatpush1.msra.mxu0 0.0
  %1013 = vmatprep.subr.mxu0 0.0
  %1014 = vmatpush1.msra.mxu0 0.0
  %1015 = vmatprep.mubr.f32.mxu0 0.0
  %1016 = vmatmul.mubr.f32.gmra.mrb[0].mxu0 %v946
  %v1017 = vpop.f32.mrb[0].mxu0
  %v1018 = vadd.f32 0.0, %v1017
  %v1019 = vpop.f32.mrb[0].mxu0
  %1020 = vmatprep.mubr.f32.mxu0 0.0
  %1021 = vmatmul.mubr.f32.gmra.mrb[0].mxu0 %v949
  %v1022 = vpop.f32.mrb[0].mxu0
  %v1023 = vadd.f32 0.0, %v1022
  %v1024 = vpop.f32.mrb[0].mxu0
  %1025 = vdwg.mxu0
  %1026 = vxpose.xlu0.b32.start [1/16] %v1018, 128
  %1027 = vxpose.xlu0.b32.cont [2/16] %v1023, 128
  %1028 = vxpose.xlu0.b32.cont [3/16] 0.0, 128
  %1029 = vxpose.xlu0.b32.cont [4/16] 0.0, 128
  %1030 = vxpose.xlu0.b32.cont [5/16] 0.0, 128
  %1031 = vxpose.xlu0.b32.cont [6/16] 0.0, 128
  %1032 = vxpose.xlu0.b32.cont [7/16] 0.0, 128
  %1033 = vxpose.xlu0.b32.cont [8/16] 0.0, 128
  %1034 = vxpose.xlu0.b32.cont [9/16] 0.0, 128
  %1035 = vxpose.xlu0.b32.cont [10/16] 0.0, 128
  %1036 = vxpose.xlu0.b32.cont [11/16] 0.0, 128
  %1037 = vxpose.xlu0.b32.cont [12/16] 0.0, 128
  %1038 = vxpose.xlu0.b32.cont [13/16] 0.0, 128
  %1039 = vxpose.xlu0.b32.cont [14/16] 0.0, 128
  %1040 = vxpose.xlu0.b32.cont [15/16] 0.0, 128
  %1041 = vxpose.xlu0.b32.end [16/16] 0.0, 128
  %v1042 = vpop.trf.xlu0
  %v1043 = vpop.trf.xlu0
  %v1044 = vpop.trf.xlu0
  %v1045 = vpop.trf.xlu0
  %v1046 = vpop.trf.xlu0
  %v1047 = vpop.trf.xlu0
  %v1048 = vpop.trf.xlu0
  %v1049 = vpop.trf.xlu0
  %v1050 = vpop.trf.xlu0
  %v1051 = vpop.trf.xlu0
  %v1052 = vpop.trf.xlu0
  %v1053 = vpop.trf.xlu0
  %v1054 = vpop.trf.xlu0
  %v1055 = vpop.trf.xlu0
  %v1056 = vpop.trf.xlu0
  %v1057 = vpop.trf.xlu0
  %1059 = vset.pattern.permute.xlu0 0
  %1060 = vperm.xlu0 %1059, %v929
  %v1061 = vpop.permute.xlu0 %1060
  %1064 = vset.pattern.permute.xlu0 0
  %1065 = vperm.xlu0 %1064, %v934
  %v1066 = vpop.permute.xlu0 %1065
  %v1068 = vlaneseq
  %v1069 = vshrl.u32 %v1068, 7
  %v1070 = vsub.s32 0, %v1069
  %v1071 = vrot.slane %v1042, %v1070
  %v1072 = vadd.f32 %v1061, %v1071
  %v1073 = vadd.f32 %v1066, %v1071
  %vm1074 = vcmp.ge.f32.partialorder %v1072, 0.0
  %vm1075 = vcmp.ge.f32.partialorder %v1073, 0.0
  %v1076 = vmul.f32 %v1072, 0.2
  %v1077 = vmul.f32 %v1073, 0.2
  %v1078 = vsel %vm1074, %v1072, %v1076
  %v1079 = vsel %vm1075, %v1073, %v1077
  %v1080 = vadd.f32 %v1078, %v127
  %v1081 = vadd.f32 %v1079, %v128
  %v1082 = vsel %vm454, %v1080, -inf
  %1083 = vmax.xlane.f32.xlu0 %v1082
  %v1084 = vpop.xlane.xlu0 %1083
  %v1085 = vsel %vm454, %v1081, -inf
  %1086 = vmax.xlane.f32.xlu0 %v1085
  %v1087 = vpop.xlane.xlu0 %1086
  %v1088 = vsub.f32 %v1080, %v1084
  %v1089 = vsub.f32 %v1081, %v1087
  %v1090 = vmul.f32 %v1088, 1.442695
  %v1091 = vpow.pop %v1090
  %v1092 = vmul.f32 %v1089, 1.442695
  %v1093 = vpow.pop %v1092
  %v1094 = vsel %vm454, %v1091, 0.0
  %1095 = vadd.xlane.f32.xlu0 %v1094
  %v1096 = vpop.xlane.xlu0 %1095
  %v1097 = vsel %vm454, %v1093, 0.0
  %1098 = vadd.xlane.f32.xlu0 %v1097
  %v1099 = vpop.xlane.xlu0 %1098
  %1100 = vset.pattern.permute.xlu0 1
  %1101 = vperm.xlu0 %1100, %v929
  %v1102 = vpop.permute.xlu0 %1101
  %1104 = vset.pattern.permute.xlu0 1
  %1105 = vperm.xlu0 %1104, %v934
  %v1106 = vpop.permute.xlu0 %1105
  %v1108 = vlaneseq
  %v1109 = vshrl.u32 %v1108, 7
  %v1110 = vsub.s32 1, %v1109
  %v1111 = vrot.slane %v1042, %v1110
  %v1112 = vadd.f32 %v1102, %v1111
  %v1113 = vadd.f32 %v1106, %v1111
  %vm1114 = vcmp.ge.f32.partialorder %v1112, 0.0
  %vm1115 = vcmp.ge.f32.partialorder %v1113, 0.0
  %v1116 = vmul.f32 %v1112, 0.2
  %v1117 = vmul.f32 %v1113, 0.2
  %v1118 = vsel %vm1114, %v1112, %v1116
  %v1119 = vsel %vm1115, %v1113, %v1117
  %v1120 = vadd.f32 %v1118, %v127
  %v1121 = vadd.f32 %v1119, %v128
  %v1122 = vsel %vm454, %v1120, -inf
  %1123 = vmax.xlane.f32.xlu0 %v1122
  %v1124 = vpop.xlane.xlu0 %1123
  %v1125 = vsel %vm454, %v1121, -inf
  %1126 = vmax.xlane.f32.xlu0 %v1125
  %v1127 = vpop.xlane.xlu0 %1126
  %v1128 = vsub.f32 %v1120, %v1124
  %v1129 = vsub.f32 %v1121, %v1127
  %v1130 = vmul.f32 %v1128, 1.442695
  %v1131 = vpow.pop %v1130
  %v1132 = vmul.f32 %v1129, 1.442695
  %v1133 = vpow.pop %v1132
  %v1134 = vsel %vm454, %v1131, 0.0
  %1135 = vadd.xlane.f32.xlu0 %v1134
  %v1136 = vpop.xlane.xlu0 %1135
  %v1137 = vsel %vm454, %v1133, 0.0
  %1138 = vadd.xlane.f32.xlu0 %v1137
  %v1139 = vpop.xlane.xlu0 %1138
  %1140 = vset.pattern.permute.xlu0 2
  %1141 = vperm.xlu0 %1140, %v929
  %v1142 = vpop.permute.xlu0 %1141
  %1144 = vset.pattern.permute.xlu0 2
  %1145 = vperm.xlu0 %1144, %v934
  %v1146 = vpop.permute.xlu0 %1145
  %v1148 = vlaneseq
  %v1149 = vshrl.u32 %v1148, 7
  %v1150 = vsub.s32 2, %v1149
  %v1151 = vrot.slane %v1042, %v1150
  %v1152 = vadd.f32 %v1142, %v1151
  %v1153 = vadd.f32 %v1146, %v1151
  %vm1154 = vcmp.ge.f32.partialorder %v1152, 0.0
  %vm1155 = vcmp.ge.f32.partialorder %v1153, 0.0
  %v1156 = vmul.f32 %v1152, 0.2
  %v1157 = vmul.f32 %v1153, 0.2
  %v1158 = vsel %vm1154, %v1152, %v1156
  %v1159 = vsel %vm1155, %v1153, %v1157
  %v1160 = vadd.f32 %v1158, %v127
  %v1161 = vadd.f32 %v1159, %v128
  %v1162 = vsel %vm454, %v1160, -inf
  %1163 = vmax.xlane.f32.xlu0 %v1162
  %v1164 = vpop.xlane.xlu0 %1163
  %v1165 = vsel %vm454, %v1161, -inf
  %1166 = vmax.xlane.f32.xlu0 %v1165
  %v1167 = vpop.xlane.xlu0 %1166
  %v1168 = vsub.f32 %v1160, %v1164
  %v1169 = vsub.f32 %v1161, %v1167
  %v1170 = vmul.f32 %v1168, 1.442695
  %v1171 = vpow.pop %v1170
  %v1172 = vmul.f32 %v1169, 1.442695
  %v1173 = vpow.pop %v1172
  %v1174 = vsel %vm454, %v1171, 0.0
  %1175 = vadd.xlane.f32.xlu0 %v1174
  %v1176 = vpop.xlane.xlu0 %1175
  %v1177 = vsel %vm454, %v1173, 0.0
  %1178 = vadd.xlane.f32.xlu0 %v1177
  %v1179 = vpop.xlane.xlu0 %1178
  %1180 = vset.pattern.permute.xlu0 3
  %1181 = vperm.xlu0 %1180, %v929
  %v1182 = vpop.permute.xlu0 %1181
  %1184 = vset.pattern.permute.xlu0 3
  %1185 = vperm.xlu0 %1184, %v934
  %v1186 = vpop.permute.xlu0 %1185
  %v1188 = vlaneseq
  %v1189 = vshrl.u32 %v1188, 7
  %v1190 = vsub.s32 3, %v1189
  %v1191 = vrot.slane %v1042, %v1190
  %v1192 = vadd.f32 %v1182, %v1191
  %v1193 = vadd.f32 %v1186, %v1191
  %vm1194 = vcmp.ge.f32.partialorder %v1192, 0.0
  %vm1195 = vcmp.ge.f32.partialorder %v1193, 0.0
  %v1196 = vmul.f32 %v1192, 0.2
  %v1197 = vmul.f32 %v1193, 0.2
  %v1198 = vsel %vm1194, %v1192, %v1196
  %v1199 = vsel %vm1195, %v1193, %v1197
  %v1200 = vadd.f32 %v1198, %v127
  %v1201 = vadd.f32 %v1199, %v128
  %v1202 = vsel %vm454, %v1200, -inf
  %1203 = vmax.xlane.f32.xlu0 %v1202
  %v1204 = vpop.xlane.xlu0 %1203
  %v1205 = vsel %vm454, %v1201, -inf
  %1206 = vmax.xlane.f32.xlu0 %v1205
  %v1207 = vpop.xlane.xlu0 %1206
  %v1208 = vsub.f32 %v1200, %v1204
  %v1209 = vsub.f32 %v1201, %v1207
  %v1210 = vmul.f32 %v1208, 1.442695
  %v1211 = vpow.pop %v1210
  %v1212 = vmul.f32 %v1209, 1.442695
  %v1213 = vpow.pop %v1212
  %v1214 = vsel %vm454, %v1211, 0.0
  %1215 = vadd.xlane.f32.xlu0 %v1214
  %v1216 = vpop.xlane.xlu0 %1215
  %v1217 = vsel %vm454, %v1213, 0.0
  %1218 = vadd.xlane.f32.xlu0 %v1217
  %v1219 = vpop.xlane.xlu0 %1218
  %v1220 = vld [vmem:[%s27] sm:$0xf]
  %1223 = vrot.lane.b32.xlu0 %v1131, 16
  %v1224 = vpop.permute.xlu0 %1223
  %1225 = vrot.lane.b32.xlu0 %v1133, 16
  %v1226 = vpop.permute.xlu0 %1225
  %1231 = vrot.lane.b32.xlu0 %v1171, 32
  %v1232 = vpop.permute.xlu0 %1231
  %1233 = vrot.lane.b32.xlu0 %v1173, 32
  %v1234 = vpop.permute.xlu0 %1233
  %1239 = vrot.lane.b32.xlu0 %v1211, 48
  %v1240 = vpop.permute.xlu0 %1239
  %1241 = vrot.lane.b32.xlu0 %v1213, 48
  %v1242 = vpop.permute.xlu0 %1241
  %v1245 = vsel %vm454, %v1091, %v1224
  %v1246 = vsel %vm454, %v1093, %v1226
  %v1247 = vsel %vm227, %v1245, %v1232
  %v1248 = vsel %vm227, %v1246, %v1234
  %v1249 = vsel %vm622, %v1247, %v1240
  %v1250 = vsel %vm622, %v1248, %v1242
  %v1251 = vlaneseq
  %v1252 = vshrl.u32 %v1251, 7
  %v1253 = vsub.s32 0, %v1252
  %v1254 = vrot.slane %v1220, %v1253
  %v1255 = vmul.f32 %v836, %v1254
  %v1256 = vmul.f32 %v841, %v1254
  %v1257 = vlaneseq
  %v1258 = vshrl.u32 %v1257, 7
  %v1259 = vsub.s32 1, %v1258
  %v1260 = vrot.slane %v1220, %v1259
  %v1261 = vmul.f32 %v836, %v1260
  %v1262 = vmul.f32 %v841, %v1260
  %v1263 = vlaneseq
  %v1264 = vshrl.u32 %v1263, 7
  %v1265 = vsub.s32 2, %v1264
  %v1266 = vrot.slane %v1220, %v1265
  %v1267 = vmul.f32 %v836, %v1266
  %v1268 = vmul.f32 %v841, %v1266
  %v1269 = vlaneseq
  %v1270 = vshrl.u32 %v1269, 7
  %v1271 = vsub.s32 3, %v1270
  %v1272 = vrot.slane %v1220, %v1271
  %v1273 = vmul.f32 %v836, %v1272
  %v1274 = vmul.f32 %v841, %v1272
  %v1275 = vsel %vm133, %v1096, %v1136
  %v1276 = vsel %vm133, %v1099, %v1139
  %v1277 = vsel %vm454, %v1275, %v1176
  %v1278 = vsel %vm454, %v1276, %v1179
  %v1279 = vsel %vm653, %v1277, %v1216
  %v1280 = vsel %vm653, %v1278, %v1219
  %v1282 = vsel %vm656, %v1249, 0
  %v1285 = vsel %vm656, %v1250, 0
  %1287 = vmatprep.subr.mxu0 0.0
  %1288 = vmatpush1.msra.mxu0 %v1255
  %1289 = vmatprep.subr.mxu0 0.0
  %1290 = vmatpush1.msra.mxu0 %v1256
  %1291 = vmatprep.subr.mxu0 0.0
  %1292 = vmatpush1.msra.mxu0 %v1261
  %1293 = vmatprep.subr.mxu0 0.0
  %1294 = vmatpush1.msra.mxu0 %v1262
  %1295 = vmatprep.subr.mxu0 0.0
  %1296 = vmatpush1.msra.mxu0 %v1267
  %1297 = vmatprep.subr.mxu0 0.0
  %1298 = vmatpush1.msra.mxu0 %v1268
  %1299 = vmatprep.subr.mxu0 0.0
  %1300 = vmatpush1.msra.mxu0 %v1273
  %1301 = vmatprep.subr.mxu0 0.0
  %1302 = vmatpush1.msra.mxu0 %v1274
  %1303 = vmatprep.subr.mxu0 0.0
  %1304 = vmatpush1.msra.mxu0 0.0
  %1305 = vmatprep.subr.mxu0 0.0
  %1306 = vmatpush1.msra.mxu0 0.0
  %1307 = vmatprep.subr.mxu0 0.0
  %1308 = vmatpush1.msra.mxu0 0.0
  %1309 = vmatprep.subr.mxu0 0.0
  %1310 = vmatpush1.msra.mxu0 0.0
  %1311 = vmatprep.subr.mxu0 0.0
  %1312 = vmatpush1.msra.mxu0 0.0
  %1313 = vmatprep.subr.mxu0 0.0
  %1314 = vmatpush1.msra.mxu0 0.0
  %1315 = vmatprep.subr.mxu0 0.0
  %1316 = vmatpush1.msra.mxu0 0.0
  %1317 = vmatprep.subr.mxu0 0.0
  %1318 = vmatpush1.msra.mxu0 0.0
  %1319 = vmatprep.subr.mxu0 0.0
  %1320 = vmatpush1.msra.mxu0 0.0
  %1321 = vmatprep.subr.mxu0 0.0
  %1322 = vmatpush1.msra.mxu0 0.0
  %1323 = vmatprep.subr.mxu0 0.0
  %1324 = vmatpush1.msra.mxu0 0.0
  %1325 = vmatprep.subr.mxu0 0.0
  %1326 = vmatpush1.msra.mxu0 0.0
  %1327 = vmatprep.subr.mxu0 0.0
  %1328 = vmatpush1.msra.mxu0 0.0
  %1329 = vmatprep.subr.mxu0 0.0
  %1330 = vmatpush1.msra.mxu0 0.0
  %1331 = vmatprep.subr.mxu0 0.0
  %1332 = vmatpush1.msra.mxu0 0.0
  %1333 = vmatprep.subr.mxu0 0.0
  %1334 = vmatpush1.msra.mxu0 0.0
  %1335 = vmatprep.subr.mxu0 0.0
  %1336 = vmatpush1.msra.mxu0 0.0
  %1337 = vmatprep.subr.mxu0 0.0
  %1338 = vmatpush1.msra.mxu0 0.0
  %1339 = vmatprep.subr.mxu0 0.0
  %1340 = vmatpush1.msra.mxu0 0.0
  %1341 = vmatprep.subr.mxu0 0.0
  %1342 = vmatpush1.msra.mxu0 0.0
  %1343 = vmatprep.subr.mxu0 0.0
  %1344 = vmatpush1.msra.mxu0 0.0
  %1345 = vmatprep.subr.mxu0 0.0
  %1346 = vmatpush1.msra.mxu0 0.0
  %1347 = vmatprep.subr.mxu0 0.0
  %1348 = vmatpush1.msra.mxu0 0.0
  %1349 = vmatprep.subr.mxu0 0.0
  %1350 = vmatpush1.msra.mxu0 0.0
  %1351 = vmatprep.mubr.f32.mxu0 0.0
  %1352 = vmatmul.mubr.f32.gmra.mrb[0].mxu0 %v1282
  %v1353 = vpop.f32.mrb[0].mxu0
  %v1354 = vadd.f32 0.0, %v1353
  %v1355 = vpop.f32.mrb[0].mxu0
  %1356 = vmatprep.mubr.f32.mxu0 0.0
  %1357 = vmatmul.mubr.f32.gmra.mrb[0].mxu0 %v1285
  %v1358 = vpop.f32.mrb[0].mxu0
  %v1359 = vadd.f32 0.0, %v1358
  %v1360 = vpop.f32.mrb[0].mxu0
  %1361 = vdwg.mxu0
  %v1362 = vrcp.pop %v1279
  %v1363 = vmul.f32 %v1354, %v1362
  %v1364 = vrcp.pop %v1280
  %v1365 = vmul.f32 %v1359, %v1364
  %v1367 = vlaneseq
  %v1368 = vshrl.u32 %v1367, 7
  %v1369 = vsub.s32 0, %v1368
  %v1370 = vrot.slane %v762, %v1369
  %v1372 = vadd.f32 %v1363, %v1370
  %v1373 = vadd.f32 %v1365, %v1370
  %vm1374 = vcmp.ge.f32.partialorder %v1372, 0.0
  %vm1375 = vcmp.ge.f32.partialorder %v1373, 0.0
  %v1376 = vmul.f32 %v1372, 0.01
  %v1377 = vmul.f32 %v1373, 0.01
  %v1378 = vsel %vm1374, %v1372, %v1376
  %v1379 = vsel %vm1375, %v1373, %v1377
  %v1380 = vld [vmem:[%s29] sm:$0xff]
  %v1381 = vld [vmem:[%s29 + $0x8] sm:$0xff]
  %v1382 = vld [vmem:[%s29 + $0x10] sm:$0xff]
  %v1383 = vld [vmem:[%s29 + $0x18] sm:$0xff]
  %v1384 = vld [vmem:[%s31] sm:$0x1]
  %v1385 = vld [vmem:[%s33] sm:$0x1]
  %v1386 = vld [vmem:[%s35] sm:$0x1]
  %v1388 = vsel %vm227, %v1378, 0
  %v1391 = vsel %vm227, %v1379, 0
  %1393 = vmatprep.subr.mxu0 0.0
  %1394 = vmatpush1.msra.mxu0 %v1380
  %1395 = vmatprep.subr.mxu0 0.0
  %1396 = vmatpush1.msra.mxu0 %v1381
  %1397 = vmatprep.subr.mxu0 0.0
  %1398 = vmatpush1.msra.mxu0 %v1382
  %1399 = vmatprep.subr.mxu0 0.0
  %1400 = vmatpush1.msra.mxu0 %v1383
  %1401 = vmatprep.subr.mxu0 0.0
  %1402 = vmatpush1.msra.mxu0 0.0
  %1403 = vmatprep.subr.mxu0 0.0
  %1404 = vmatpush1.msra.mxu0 0.0
  %1405 = vmatprep.subr.mxu0 0.0
  %1406 = vmatpush1.msra.mxu0 0.0
  %1407 = vmatprep.subr.mxu0 0.0
  %1408 = vmatpush1.msra.mxu0 0.0
  %1409 = vmatprep.subr.mxu0 0.0
  %1410 = vmatpush1.msra.mxu0 0.0
  %1411 = vmatprep.subr.mxu0 0.0
  %1412 = vmatpush1.msra.mxu0 0.0
  %1413 = vmatprep.subr.mxu0 0.0
  %1414 = vmatpush1.msra.mxu0 0.0
  %1415 = vmatprep.subr.mxu0 0.0
  %1416 = vmatpush1.msra.mxu0 0.0
  %1417 = vmatprep.subr.mxu0 0.0
  %1418 = vmatpush1.msra.mxu0 0.0
  %1419 = vmatprep.subr.mxu0 0.0
  %1420 = vmatpush1.msra.mxu0 0.0
  %1421 = vmatprep.subr.mxu0 0.0
  %1422 = vmatpush1.msra.mxu0 0.0
  %1423 = vmatprep.subr.mxu0 0.0
  %1424 = vmatpush1.msra.mxu0 0.0
  %1425 = vmatprep.subr.mxu0 0.0
  %1426 = vmatpush1.msra.mxu0 0.0
  %1427 = vmatprep.subr.mxu0 0.0
  %1428 = vmatpush1.msra.mxu0 0.0
  %1429 = vmatprep.subr.mxu0 0.0
  %1430 = vmatpush1.msra.mxu0 0.0
  %1431 = vmatprep.subr.mxu0 0.0
  %1432 = vmatpush1.msra.mxu0 0.0
  %1433 = vmatprep.subr.mxu0 0.0
  %1434 = vmatpush1.msra.mxu0 0.0
  %1435 = vmatprep.subr.mxu0 0.0
  %1436 = vmatpush1.msra.mxu0 0.0
  %1437 = vmatprep.subr.mxu0 0.0
  %1438 = vmatpush1.msra.mxu0 0.0
  %1439 = vmatprep.subr.mxu0 0.0
  %1440 = vmatpush1.msra.mxu0 0.0
  %1441 = vmatprep.subr.mxu0 0.0
  %1442 = vmatpush1.msra.mxu0 0.0
  %1443 = vmatprep.subr.mxu0 0.0
  %1444 = vmatpush1.msra.mxu0 0.0
  %1445 = vmatprep.subr.mxu0 0.0
  %1446 = vmatpush1.msra.mxu0 0.0
  %1447 = vmatprep.subr.mxu0 0.0
  %1448 = vmatpush1.msra.mxu0 0.0
  %1449 = vmatprep.subr.mxu0 0.0
  %1450 = vmatpush1.msra.mxu0 0.0
  %1451 = vmatprep.subr.mxu0 0.0
  %1452 = vmatpush1.msra.mxu0 0.0
  %1453 = vmatprep.subr.mxu0 0.0
  %1454 = vmatpush1.msra.mxu0 0.0
  %1455 = vmatprep.subr.mxu0 0.0
  %1456 = vmatpush1.msra.mxu0 0.0
  %1457 = vmatprep.mubr.f32.mxu0 0.0
  %1458 = vmatmul.mubr.f32.gmra.mrb[0].mxu0 %v1388
  %v1459 = vpop.f32.mrb[0].mxu0
  %v1460 = vadd.f32 0.0, %v1459
  %v1461 = vpop.f32.mrb[0].mxu0
  %1462 = vmatprep.mubr.f32.mxu0 0.0
  %1463 = vmatmul.mubr.f32.gmra.mrb[0].mxu0 %v1391
  %v1464 = vpop.f32.mrb[0].mxu0
  %v1465 = vadd.f32 0.0, %v1464
  %v1466 = vpop.f32.mrb[0].mxu0
  %1467 = vdwg.mxu0
  %v1469 = vlaneseq
  %v1470 = vshrl.u32 %v1469, 7
  %v1471 = vsub.s32 0, %v1470
  %v1472 = vrot.slane %v1385, %v1471
  %v1474 = vmul.f32 %v1460, %v1472
  %v1475 = vmul.f32 %v1465, %v1472
  %vm1476 = vcmask 31744
  %v1477 = vsel %vm1476, %v1474, 0.0
  %1478 = vadd.xlane.f32.xlu0 %v1477
  %v1479 = vpop.xlane.xlu0 %1478
  %v1480 = vsel %vm1476, %v1475, 0.0
  %1481 = vadd.xlane.f32.xlu0 %v1480
  %v1482 = vpop.xlane.xlu0 %1481
  %v1484 = vlaneseq
  %v1485 = vshrl.u32 %v1484, 7
  %v1486 = vsub.s32 0, %v1485
  %v1487 = vrot.slane %v1384, %v1486
  %v1489 = vmul.f32 %v1460, %v1487
  %v1490 = vmul.f32 %v1465, %v1487
  %v1491 = vsel %vm1476, %v1489, 0.0
  %1492 = vadd.xlane.f32.xlu0 %v1491
  %v1493 = vpop.xlane.xlu0 %1492
  %v1494 = vsel %vm1476, %v1490, 0.0
  %1495 = vadd.xlane.f32.xlu0 %v1494
  %v1496 = vpop.xlane.xlu0 %1495
  %1497 = vxpose.xlu0.b32.start [1/16] %v1493, 128
  %1498 = vxpose.xlu0.b32.cont [2/16] %v1496, 128
  %1499 = vxpose.xlu0.b32.cont [3/16] 0.0, 128
  %1500 = vxpose.xlu0.b32.cont [4/16] 0.0, 128
  %1501 = vxpose.xlu0.b32.cont [5/16] 0.0, 128
  %1502 = vxpose.xlu0.b32.cont [6/16] 0.0, 128
  %1503 = vxpose.xlu0.b32.cont [7/16] 0.0, 128
  %1504 = vxpose.xlu0.b32.cont [8/16] 0.0, 128
  %1505 = vxpose.xlu0.b32.cont [9/16] 0.0, 128
  %1506 = vxpose.xlu0.b32.cont [10/16] 0.0, 128
  %1507 = vxpose.xlu0.b32.cont [11/16] 0.0, 128
  %1508 = vxpose.xlu0.b32.cont [12/16] 0.0, 128
  %1509 = vxpose.xlu0.b32.cont [13/16] 0.0, 128
  %1510 = vxpose.xlu0.b32.cont [14/16] 0.0, 128
  %1511 = vxpose.xlu0.b32.cont [15/16] 0.0, 128
  %1512 = vxpose.xlu0.b32.end [16/16] 0.0, 128
  %v1513 = vpop.trf.xlu0
  %v1514 = vpop.trf.xlu0
  %v1515 = vpop.trf.xlu0
  %v1516 = vpop.trf.xlu0
  %v1517 = vpop.trf.xlu0
  %v1518 = vpop.trf.xlu0
  %v1519 = vpop.trf.xlu0
  %v1520 = vpop.trf.xlu0
  %v1521 = vpop.trf.xlu0
  %v1522 = vpop.trf.xlu0
  %v1523 = vpop.trf.xlu0
  %v1524 = vpop.trf.xlu0
  %v1525 = vpop.trf.xlu0
  %v1526 = vpop.trf.xlu0
  %v1527 = vpop.trf.xlu0
  %v1528 = vpop.trf.xlu0
  %v1529 = vlaneseq
  %v1530 = vshrl.u32 %v1529, 7
  %v1531 = vsub.s32 0, %v1530
  %v1532 = vrot.slane %v1513, %v1531
  %v1533 = vadd.f32 %v1479, %v1532
  %v1534 = vadd.f32 %v1482, %v1532
  %vm1535 = vcmp.ge.f32.partialorder %v1533, 0.0
  %vm1536 = vcmp.ge.f32.partialorder %v1534, 0.0
  %v1537 = vmul.f32 %v1533, 0.2
  %v1538 = vmul.f32 %v1534, 0.2
  %v1539 = vsel %vm1535, %v1533, %v1537
  %v1540 = vsel %vm1536, %v1534, %v1538
  %v1541 = vadd.f32 %v1539, %v127
  %v1542 = vadd.f32 %v1540, %v128
  %v1543 = vsel %vm454, %v1541, -inf
  %1544 = vmax.xlane.f32.xlu0 %v1543
  %v1545 = vpop.xlane.xlu0 %1544
  %v1546 = vsel %vm454, %v1542, -inf
  %1547 = vmax.xlane.f32.xlu0 %v1546
  %v1548 = vpop.xlane.xlu0 %1547
  %v1549 = vsub.f32 %v1541, %v1545
  %v1550 = vsub.f32 %v1542, %v1548
  %v1551 = vmul.f32 %v1549, 1.442695
  %v1552 = vpow.pop %v1551
  %v1553 = vmul.f32 %v1550, 1.442695
  %v1554 = vpow.pop %v1553
  %v1555 = vsel %vm454, %v1552, 0.0
  %1556 = vadd.xlane.f32.xlu0 %v1555
  %v1557 = vpop.xlane.xlu0 %1556
  %v1558 = vsel %vm454, %v1554, 0.0
  %1559 = vadd.xlane.f32.xlu0 %v1558
  %v1560 = vpop.xlane.xlu0 %1559
  %v1562 = vsel %vm454, %v1552, 0
  %v1565 = vsel %vm454, %v1554, 0
  %1567 = vmatprep.subr.mxu0 0.0
  %1568 = vmatpush1.msra.mxu0 %v1460
  %1569 = vmatprep.subr.mxu0 0.0
  %1570 = vmatpush1.msra.mxu0 %v1465
  %1571 = vmatprep.subr.mxu0 0.0
  %1572 = vmatpush1.msra.mxu0 0.0
  %1573 = vmatprep.subr.mxu0 0.0
  %1574 = vmatpush1.msra.mxu0 0.0
  %1575 = vmatprep.subr.mxu0 0.0
  %1576 = vmatpush1.msra.mxu0 0.0
  %1577 = vmatprep.subr.mxu0 0.0
  %1578 = vmatpush1.msra.mxu0 0.0
  %1579 = vmatprep.subr.mxu0 0.0
  %1580 = vmatpush1.msra.mxu0 0.0
  %1581 = vmatprep.subr.mxu0 0.0
  %1582 = vmatpush1.msra.mxu0 0.0
  %1583 = vmatprep.subr.mxu0 0.0
  %1584 = vmatpush1.msra.mxu0 0.0
  %1585 = vmatprep.subr.mxu0 0.0
  %1586 = vmatpush1.msra.mxu0 0.0
  %1587 = vmatprep.subr.mxu0 0.0
  %1588 = vmatpush1.msra.mxu0 0.0
  %1589 = vmatprep.subr.mxu0 0.0
  %1590 = vmatpush1.msra.mxu0 0.0
  %1591 = vmatprep.subr.mxu0 0.0
  %1592 = vmatpush1.msra.mxu0 0.0
  %1593 = vmatprep.subr.mxu0 0.0
  %1594 = vmatpush1.msra.mxu0 0.0
  %1595 = vmatprep.subr.mxu0 0.0
  %1596 = vmatpush1.msra.mxu0 0.0
  %1597 = vmatprep.subr.mxu0 0.0
  %1598 = vmatpush1.msra.mxu0 0.0
  %1599 = vmatprep.subr.mxu0 0.0
  %1600 = vmatpush1.msra.mxu0 0.0
  %1601 = vmatprep.subr.mxu0 0.0
  %1602 = vmatpush1.msra.mxu0 0.0
  %1603 = vmatprep.subr.mxu0 0.0
  %1604 = vmatpush1.msra.mxu0 0.0
  %1605 = vmatprep.subr.mxu0 0.0
  %1606 = vmatpush1.msra.mxu0 0.0
  %1607 = vmatprep.subr.mxu0 0.0
  %1608 = vmatpush1.msra.mxu0 0.0
  %1609 = vmatprep.subr.mxu0 0.0
  %1610 = vmatpush1.msra.mxu0 0.0
  %1611 = vmatprep.subr.mxu0 0.0
  %1612 = vmatpush1.msra.mxu0 0.0
  %1613 = vmatprep.subr.mxu0 0.0
  %1614 = vmatpush1.msra.mxu0 0.0
  %1615 = vmatprep.subr.mxu0 0.0
  %1616 = vmatpush1.msra.mxu0 0.0
  %1617 = vmatprep.subr.mxu0 0.0
  %1618 = vmatpush1.msra.mxu0 0.0
  %1619 = vmatprep.subr.mxu0 0.0
  %1620 = vmatpush1.msra.mxu0 0.0
  %1621 = vmatprep.subr.mxu0 0.0
  %1622 = vmatpush1.msra.mxu0 0.0
  %1623 = vmatprep.subr.mxu0 0.0
  %1624 = vmatpush1.msra.mxu0 0.0
  %1625 = vmatprep.subr.mxu0 0.0
  %1626 = vmatpush1.msra.mxu0 0.0
  %1627 = vmatprep.subr.mxu0 0.0
  %1628 = vmatpush1.msra.mxu0 0.0
  %1629 = vmatprep.subr.mxu0 0.0
  %1630 = vmatpush1.msra.mxu0 0.0
  %1631 = vmatprep.mubr.f32.mxu0 0.0
  %1632 = vmatmul.mubr.f32.gmra.mrb[0].mxu0 %v1562
  %v1633 = vpop.f32.mrb[0].mxu0
  %v1634 = vadd.f32 0.0, %v1633
  %v1635 = vpop.f32.mrb[0].mxu0
  %1636 = vmatprep.mubr.f32.mxu0 0.0
  %1637 = vmatmul.mubr.f32.gmra.mrb[0].mxu0 %v1565
  %v1638 = vpop.f32.mrb[0].mxu0
  %v1639 = vadd.f32 0.0, %v1638
  %v1640 = vpop.f32.mrb[0].mxu0
  %1641 = vdwg.mxu0
  %v1642 = vrcp.pop %v1557
  %v1643 = vmul.f32 %v1634, %v1642
  %v1644 = vrcp.pop %v1560
  %v1645 = vmul.f32 %v1639, %v1644
  %v1647 = vlaneseq
  %v1648 = vshrl.u32 %v1647, 7
  %v1649 = vsub.s32 0, %v1648
  %v1650 = vrot.slane %v1386, %v1649
  %v1652 = vadd.f32 %v1643, %v1650
  %v1653 = vadd.f32 %v1645, %v1650
  %v1654 = vld [vmem:[%s41] sm:$0xf]
  %v1655 = vld [vmem:[%s43] sm:$0x1]
  %v1656 = vld [vmem:[%s45] sm:$0x1]
  %v1657 = vld [vmem:[%s47] sm:$0x1]
  %v1659 = vsel %vm1476, %v1652, 0
  %v1662 = vsel %vm1476, %v1653, 0
  %vm1664 = vcmask 1043456
  %v1666 = vsel %vm1664, %v1654, 0
  %1668 = vmatprep.subr.mxu0 0.0
  %1669 = vmatpush1.msra.mxu0 %v1666
  %1670 = vmatprep.subr.mxu0 0.0
  %1671 = vmatpush1.msra.mxu0 0.0
  %1672 = vmatprep.subr.mxu0 0.0
  %1673 = vmatpush1.msra.mxu0 0.0
  %1674 = vmatprep.subr.mxu0 0.0
  %1675 = vmatpush1.msra.mxu0 0.0
  %1676 = vmatprep.subr.mxu0 0.0
  %1677 = vmatpush1.msra.mxu0 0.0
  %1678 = vmatprep.subr.mxu0 0.0
  %1679 = vmatpush1.msra.mxu0 0.0
  %1680 = vmatprep.subr.mxu0 0.0
  %1681 = vmatpush1.msra.mxu0 0.0
  %1682 = vmatprep.subr.mxu0 0.0
  %1683 = vmatpush1.msra.mxu0 0.0
  %1684 = vmatprep.subr.mxu0 0.0
  %1685 = vmatpush1.msra.mxu0 0.0
  %1686 = vmatprep.subr.mxu0 0.0
  %1687 = vmatpush1.msra.mxu0 0.0
  %1688 = vmatprep.subr.mxu0 0.0
  %1689 = vmatpush1.msra.mxu0 0.0
  %1690 = vmatprep.subr.mxu0 0.0
  %1691 = vmatpush1.msra.mxu0 0.0
  %1692 = vmatprep.subr.mxu0 0.0
  %1693 = vmatpush1.msra.mxu0 0.0
  %1694 = vmatprep.subr.mxu0 0.0
  %1695 = vmatpush1.msra.mxu0 0.0
  %1696 = vmatprep.subr.mxu0 0.0
  %1697 = vmatpush1.msra.mxu0 0.0
  %1698 = vmatprep.subr.mxu0 0.0
  %1699 = vmatpush1.msra.mxu0 0.0
  %1700 = vmatprep.subr.mxu0 0.0
  %1701 = vmatpush1.msra.mxu0 0.0
  %1702 = vmatprep.subr.mxu0 0.0
  %1703 = vmatpush1.msra.mxu0 0.0
  %1704 = vmatprep.subr.mxu0 0.0
  %1705 = vmatpush1.msra.mxu0 0.0
  %1706 = vmatprep.subr.mxu0 0.0
  %1707 = vmatpush1.msra.mxu0 0.0
  %1708 = vmatprep.subr.mxu0 0.0
  %1709 = vmatpush1.msra.mxu0 0.0
  %1710 = vmatprep.subr.mxu0 0.0
  %1711 = vmatpush1.msra.mxu0 0.0
  %1712 = vmatprep.subr.mxu0 0.0
  %1713 = vmatpush1.msra.mxu0 0.0
  %1714 = vmatprep.subr.mxu0 0.0
  %1715 = vmatpush1.msra.mxu0 0.0
  %1716 = vmatprep.subr.mxu0 0.0
  %1717 = vmatpush1.msra.mxu0 0.0
  %1718 = vmatprep.subr.mxu0 0.0
  %1719 = vmatpush1.msra.mxu0 0.0
  %1720 = vmatprep.subr.mxu0 0.0
  %1721 = vmatpush1.msra.mxu0 0.0
  %1722 = vmatprep.subr.mxu0 0.0
  %1723 = vmatpush1.msra.mxu0 0.0
  %1724 = vmatprep.subr.mxu0 0.0
  %1725 = vmatpush1.msra.mxu0 0.0
  %1726 = vmatprep.subr.mxu0 0.0
  %1727 = vmatpush1.msra.mxu0 0.0
  %1728 = vmatprep.subr.mxu0 0.0
  %1729 = vmatpush1.msra.mxu0 0.0
  %1730 = vmatprep.subr.mxu0 0.0
  %1731 = vmatpush1.msra.mxu0 0.0
  %1732 = vmatprep.mubr.f32.mxu0 0.0
  %1733 = vmatmul.mubr.f32.gmra.mrb[0].mxu0 %v1659
  %v1734 = vpop.f32.mrb[0].mxu0
  %v1735 = vadd.f32 0.0, %v1734
  %v1736 = vpop.f32.mrb[0].mxu0
  %1737 = vmatprep.mubr.f32.mxu0 0.0
  %1738 = vmatmul.mubr.f32.gmra.mrb[0].mxu0 %v1662
  %v1739 = vpop.f32.mrb[0].mxu0
  %v1740 = vadd.f32 0.0, %v1739
  %v1741 = vpop.f32.mrb[0].mxu0
  %1742 = vdwg.mxu0
  %v1744 = vlaneseq
  %v1745 = vshrl.u32 %v1744, 7
  %v1746 = vsub.s32 0, %v1745
  %v1747 = vrot.slane %v1656, %v1746
  %v1749 = vmul.f32 %v1735, %v1747
  %v1750 = vmul.f32 %v1740, %v1747
  %v1751 = vsel %vm133, %v1749, 0.0
  %1752 = vadd.xlane.f32.xlu0 %v1751
  %v1753 = vpop.xlane.xlu0 %1752
  %v1754 = vsel %vm133, %v1750, 0.0
  %1755 = vadd.xlane.f32.xlu0 %v1754
  %v1756 = vpop.xlane.xlu0 %1755
  %v1758 = vlaneseq
  %v1759 = vshrl.u32 %v1758, 7
  %v1760 = vsub.s32 0, %v1759
  %v1761 = vrot.slane %v1655, %v1760
  %v1763 = vmul.f32 %v1735, %v1761
  %v1764 = vmul.f32 %v1740, %v1761
  %v1765 = vsel %vm133, %v1763, 0.0
  %1766 = vadd.xlane.f32.xlu0 %v1765
  %v1767 = vpop.xlane.xlu0 %1766
  %v1768 = vsel %vm133, %v1764, 0.0
  %1769 = vadd.xlane.f32.xlu0 %v1768
  %v1770 = vpop.xlane.xlu0 %1769
  %1771 = vxpose.xlu0.b32.start [1/16] %v1767, 128
  %1772 = vxpose.xlu0.b32.cont [2/16] %v1770, 128
  %1773 = vxpose.xlu0.b32.cont [3/16] 0.0, 128
  %1774 = vxpose.xlu0.b32.cont [4/16] 0.0, 128
  %1775 = vxpose.xlu0.b32.cont [5/16] 0.0, 128
  %1776 = vxpose.xlu0.b32.cont [6/16] 0.0, 128
  %1777 = vxpose.xlu0.b32.cont [7/16] 0.0, 128
  %1778 = vxpose.xlu0.b32.cont [8/16] 0.0, 128
  %1779 = vxpose.xlu0.b32.cont [9/16] 0.0, 128
  %1780 = vxpose.xlu0.b32.cont [10/16] 0.0, 128
  %1781 = vxpose.xlu0.b32.cont [11/16] 0.0, 128
  %1782 = vxpose.xlu0.b32.cont [12/16] 0.0, 128
  %1783 = vxpose.xlu0.b32.cont [13/16] 0.0, 128
  %1784 = vxpose.xlu0.b32.cont [14/16] 0.0, 128
  %1785 = vxpose.xlu0.b32.cont [15/16] 0.0, 128
  %1786 = vxpose.xlu0.b32.end [16/16] 0.0, 128
  %v1787 = vpop.trf.xlu0
  %v1788 = vpop.trf.xlu0
  %v1789 = vpop.trf.xlu0
  %v1790 = vpop.trf.xlu0
  %v1791 = vpop.trf.xlu0
  %v1792 = vpop.trf.xlu0
  %v1793 = vpop.trf.xlu0
  %v1794 = vpop.trf.xlu0
  %v1795 = vpop.trf.xlu0
  %v1796 = vpop.trf.xlu0
  %v1797 = vpop.trf.xlu0
  %v1798 = vpop.trf.xlu0
  %v1799 = vpop.trf.xlu0
  %v1800 = vpop.trf.xlu0
  %v1801 = vpop.trf.xlu0
  %v1802 = vpop.trf.xlu0
  %v1803 = vlaneseq
  %v1804 = vshrl.u32 %v1803, 7
  %v1805 = vsub.s32 0, %v1804
  %v1806 = vrot.slane %v1787, %v1805
  %v1807 = vadd.f32 %v1753, %v1806
  %v1808 = vadd.f32 %v1756, %v1806
  %vm1809 = vcmp.ge.f32.partialorder %v1807, 0.0
  %vm1810 = vcmp.ge.f32.partialorder %v1808, 0.0
  %v1811 = vmul.f32 %v1807, 0.2
  %v1812 = vmul.f32 %v1808, 0.2
  %v1813 = vsel %vm1809, %v1807, %v1811
  %v1814 = vsel %vm1810, %v1808, %v1812
  %v1815 = vadd.f32 %v1813, %v127
  %v1816 = vadd.f32 %v1814, %v128
  %v1817 = vsel %vm454, %v1815, -inf
  %1818 = vmax.xlane.f32.xlu0 %v1817
  %v1819 = vpop.xlane.xlu0 %1818
  %v1820 = vsel %vm454, %v1816, -inf
  %1821 = vmax.xlane.f32.xlu0 %v1820
  %v1822 = vpop.xlane.xlu0 %1821
  %v1823 = vsub.f32 %v1815, %v1819
  %v1824 = vsub.f32 %v1816, %v1822
  %v1825 = vmul.f32 %v1823, 1.442695
  %v1826 = vpow.pop %v1825
  %v1827 = vmul.f32 %v1824, 1.442695
  %v1828 = vpow.pop %v1827
  %v1829 = vsel %vm454, %v1826, 0.0
  %1830 = vadd.xlane.f32.xlu0 %v1829
  %v1831 = vpop.xlane.xlu0 %1830
  %v1832 = vsel %vm454, %v1828, 0.0
  %1833 = vadd.xlane.f32.xlu0 %v1832
  %v1834 = vpop.xlane.xlu0 %1833
  %v1836 = vsel %vm454, %v1826, 0
  %v1839 = vsel %vm454, %v1828, 0
  %1841 = vmatprep.subr.mxu0 0.0
  %1842 = vmatpush1.msra.mxu0 %v1735
  %1843 = vmatprep.subr.mxu0 0.0
  %1844 = vmatpush1.msra.mxu0 %v1740
  %1845 = vmatprep.subr.mxu0 0.0
  %1846 = vmatpush1.msra.mxu0 0.0
  %1847 = vmatprep.subr.mxu0 0.0
  %1848 = vmatpush1.msra.mxu0 0.0
  %1849 = vmatprep.subr.mxu0 0.0
  %1850 = vmatpush1.msra.mxu0 0.0
  %1851 = vmatprep.subr.mxu0 0.0
  %1852 = vmatpush1.msra.mxu0 0.0
  %1853 = vmatprep.subr.mxu0 0.0
  %1854 = vmatpush1.msra.mxu0 0.0
  %1855 = vmatprep.subr.mxu0 0.0
  %1856 = vmatpush1.msra.mxu0 0.0
  %1857 = vmatprep.subr.mxu0 0.0
  %1858 = vmatpush1.msra.mxu0 0.0
  %1859 = vmatprep.subr.mxu0 0.0
  %1860 = vmatpush1.msra.mxu0 0.0
  %1861 = vmatprep.subr.mxu0 0.0
  %1862 = vmatpush1.msra.mxu0 0.0
  %1863 = vmatprep.subr.mxu0 0.0
  %1864 = vmatpush1.msra.mxu0 0.0
  %1865 = vmatprep.subr.mxu0 0.0
  %1866 = vmatpush1.msra.mxu0 0.0
  %1867 = vmatprep.subr.mxu0 0.0
  %1868 = vmatpush1.msra.mxu0 0.0
  %1869 = vmatprep.subr.mxu0 0.0
  %1870 = vmatpush1.msra.mxu0 0.0
  %1871 = vmatprep.subr.mxu0 0.0
  %1872 = vmatpush1.msra.mxu0 0.0
  %1873 = vmatprep.subr.mxu0 0.0
  %1874 = vmatpush1.msra.mxu0 0.0
  %1875 = vmatprep.subr.mxu0 0.0
  %1876 = vmatpush1.msra.mxu0 0.0
  %1877 = vmatprep.subr.mxu0 0.0
  %1878 = vmatpush1.msra.mxu0 0.0
  %1879 = vmatprep.subr.mxu0 0.0
  %1880 = vmatpush1.msra.mxu0 0.0
  %1881 = vmatprep.subr.mxu0 0.0
  %1882 = vmatpush1.msra.mxu0 0.0
  %1883 = vmatprep.subr.mxu0 0.0
  %1884 = vmatpush1.msra.mxu0 0.0
  %1885 = vmatprep.subr.mxu0 0.0
  %1886 = vmatpush1.msra.mxu0 0.0
  %1887 = vmatprep.subr.mxu0 0.0
  %1888 = vmatpush1.msra.mxu0 0.0
  %1889 = vmatprep.subr.mxu0 0.0
  %1890 = vmatpush1.msra.mxu0 0.0
  %1891 = vmatprep.subr.mxu0 0.0
  %1892 = vmatpush1.msra.mxu0 0.0
  %1893 = vmatprep.subr.mxu0 0.0
  %1894 = vmatpush1.msra.mxu0 0.0
  %1895 = vmatprep.subr.mxu0 0.0
  %1896 = vmatpush1.msra.mxu0 0.0
  %1897 = vmatprep.subr.mxu0 0.0
  %1898 = vmatpush1.msra.mxu0 0.0
  %1899 = vmatprep.subr.mxu0 0.0
  %1900 = vmatpush1.msra.mxu0 0.0
  %1901 = vmatprep.subr.mxu0 0.0
  %1902 = vmatpush1.msra.mxu0 0.0
  %1903 = vmatprep.subr.mxu0 0.0
  %1904 = vmatpush1.msra.mxu0 0.0
  %1905 = vmatprep.mubr.f32.mxu0 0.0
  %1906 = vmatmul.mubr.f32.gmra.mrb[0].mxu0 %v1836
  %v1907 = vpop.f32.mrb[0].mxu0
  %v1908 = vadd.f32 0.0, %v1907
  %v1909 = vpop.f32.mrb[0].mxu0
  %1910 = vmatprep.mubr.f32.mxu0 0.0
  %1911 = vmatmul.mubr.f32.gmra.mrb[0].mxu0 %v1839
  %v1912 = vpop.f32.mrb[0].mxu0
  %v1913 = vadd.f32 0.0, %v1912
  %v1914 = vpop.f32.mrb[0].mxu0
  %1915 = vdwg.mxu0
  %v1916 = vrcp.pop %v1831
  %v1917 = vmul.f32 %v1908, %v1916
  %v1918 = vrcp.pop %v1834
  %v1919 = vmul.f32 %v1913, %v1918
  %v1921 = vlaneseq
  %v1922 = vshrl.u32 %v1921, 7
  %v1923 = vsub.s32 0, %v1922
  %v1924 = vrot.slane %v1657, %v1923
  %v1926 = vadd.f32 %v1917, %v1924
  %v1927 = vadd.f32 %v1919, %v1924
  %vm1928 = vcmp.ge.f32.partialorder %v1926, 0.0
  %vm1929 = vcmp.ge.f32.partialorder %v1927, 0.0
  %v1930 = vmul.f32 %v1926, 0.01
  %v1931 = vmul.f32 %v1927, 0.01
  %v1932 = vsel %vm1928, %v1926, %v1930
  %v1933 = vsel %vm1929, %v1927, %v1931
  %v1934 = vld [vmem:[%s53] sm:$0xff]
  %v1935 = vld [vmem:[%s55] sm:$0x1]
  %v1937 = vlaneseq
  %v1938 = vshrl.u32 %v1937, 7
  %v1939 = vsub.s32 0, %v1938
  %v1940 = vrot.slane %v1935, %v1939
  %v1943 = vsel %vm133, %v1932, 0
  %v1946 = vsel %vm133, %v1933, 0
  %1948 = vmatprep.subr.mxu0 0.0
  %1949 = vmatpush1.msra.mxu0 %v1934
  %1950 = vmatprep.subr.mxu0 0.0
  %1951 = vmatpush1.msra.mxu0 0.0
  %1952 = vmatprep.subr.mxu0 0.0
  %1953 = vmatpush1.msra.mxu0 0.0
  %1954 = vmatprep.subr.mxu0 0.0
  %1955 = vmatpush1.msra.mxu0 0.0
  %1956 = vmatprep.subr.mxu0 0.0
  %1957 = vmatpush1.msra.mxu0 0.0
  %1958 = vmatprep.subr.mxu0 0.0
  %1959 = vmatpush1.msra.mxu0 0.0
  %1960 = vmatprep.subr.mxu0 0.0
  %1961 = vmatpush1.msra.mxu0 0.0
  %1962 = vmatprep.subr.mxu0 0.0
  %1963 = vmatpush1.msra.mxu0 0.0
  %1964 = vmatprep.subr.mxu0 0.0
  %1965 = vmatpush1.msra.mxu0 0.0
  %1966 = vmatprep.subr.mxu0 0.0
  %1967 = vmatpush1.msra.mxu0 0.0
  %1968 = vmatprep.subr.mxu0 0.0
  %1969 = vmatpush1.msra.mxu0 0.0
  %1970 = vmatprep.subr.mxu0 0.0
  %1971 = vmatpush1.msra.mxu0 0.0
  %1972 = vmatprep.subr.mxu0 0.0
  %1973 = vmatpush1.msra.mxu0 0.0
  %1974 = vmatprep.subr.mxu0 0.0
  %1975 = vmatpush1.msra.mxu0 0.0
  %1976 = vmatprep.subr.mxu0 0.0
  %1977 = vmatpush1.msra.mxu0 0.0
  %1978 = vmatprep.subr.mxu0 0.0
  %1979 = vmatpush1.msra.mxu0 0.0
  %1980 = vmatprep.subr.mxu0 0.0
  %1981 = vmatpush1.msra.mxu0 0.0
  %1982 = vmatprep.subr.mxu0 0.0
  %1983 = vmatpush1.msra.mxu0 0.0
  %1984 = vmatprep.subr.mxu0 0.0
  %1985 = vmatpush1.msra.mxu0 0.0
  %1986 = vmatprep.subr.mxu0 0.0
  %1987 = vmatpush1.msra.mxu0 0.0
  %1988 = vmatprep.subr.mxu0 0.0
  %1989 = vmatpush1.msra.mxu0 0.0
  %1990 = vmatprep.subr.mxu0 0.0
  %1991 = vmatpush1.msra.mxu0 0.0
  %1992 = vmatprep.subr.mxu0 0.0
  %1993 = vmatpush1.msra.mxu0 0.0
  %1994 = vmatprep.subr.mxu0 0.0
  %1995 = vmatpush1.msra.mxu0 0.0
  %1996 = vmatprep.subr.mxu0 0.0
  %1997 = vmatpush1.msra.mxu0 0.0
  %1998 = vmatprep.subr.mxu0 0.0
  %1999 = vmatpush1.msra.mxu0 0.0
  %2000 = vmatprep.subr.mxu0 0.0
  %2001 = vmatpush1.msra.mxu0 0.0
  %2002 = vmatprep.subr.mxu0 0.0
  %2003 = vmatpush1.msra.mxu0 0.0
  %2004 = vmatprep.subr.mxu0 0.0
  %2005 = vmatpush1.msra.mxu0 0.0
  %2006 = vmatprep.subr.mxu0 0.0
  %2007 = vmatpush1.msra.mxu0 0.0
  %2008 = vmatprep.subr.mxu0 0.0
  %2009 = vmatpush1.msra.mxu0 0.0
  %2010 = vmatprep.subr.mxu0 0.0
  %2011 = vmatpush1.msra.mxu0 0.0
  %2012 = vmatprep.mubr.f32.mxu0 0.0
  %2013 = vmatmul.mubr.f32.gmra.mrb[0].mxu0 %v1943
  %v2014 = vpop.f32.mrb[0].mxu0
  %v2015 = vadd.f32 %v1940, %v2014
  %v2016 = vpop.f32.mrb[0].mxu0
  %2017 = vmatprep.mubr.f32.mxu0 0.0
  %2018 = vmatmul.mubr.f32.gmra.mrb[0].mxu0 %v1946
  %v2019 = vpop.f32.mrb[0].mxu0
  %v2020 = vadd.f32 %v1940, %v2019
  %v2021 = vpop.f32.mrb[0].mxu0
  %2022 = vdwg.mxu0
  %v2023 = vadd.f32 %v2015, %v121
  %v2024 = vadd.f32 %v2020, %v122
  %2025 = vst.msk [vmem:[%s57] sm:$0xff] %vm133, %v2023
  %2026 = vst.msk [vmem:[%s57 + $0x8] sm:$0xff] %vm133, %v2024
  %2027 = vst.msk [vmem:[%s59] sm:$0xff] %vm1476, %v1652
  %2028 = vst.msk [vmem:[%s59 + $0x8] sm:$0xff] %vm1476, %v1653
  // Predicated region
  $region114: #{gat_link_autoencoder_forward.1} parent=0 // pred_check
    _
  $region115: #{gat_link_autoencoder_forward.1} parent=0 // pred_check_branch
    %2030 = sbr.rel (0) target = $region117
  $region116: #{gat_link_autoencoder_forward.1} parent=0 // pred_region
    _
  $region117: #{gat_link_autoencoder_forward.1} parent=0 // pred_fallthru
    _
  // Predicated region
  $region118: #{gat_link_autoencoder_forward.1} parent=0 // pred_check
    _
  $region119: #{gat_link_autoencoder_forward.1} parent=0 // pred_check_branch
    %2032 = sbr.rel (0) target = $region121
  $region120: #{gat_link_autoencoder_forward.1} parent=0 // pred_region
    _
  $region121: #{gat_link_autoencoder_forward.1} parent=0 // pred_fallthru
    _
  // Predicated region
  $region122: #{gat_link_autoencoder_forward.1} parent=0 // pred_check
    _
  $region123: #{gat_link_autoencoder_forward.1} parent=0 // pred_check_branch
    %2034 = sbr.rel (0) target = $region125
  $region124: #{gat_link_autoencoder_forward.1} parent=0 // pred_region
    _
  $region125: #{gat_link_autoencoder_forward.1} parent=0 // pred_fallthru
    _
  // Predicated region
  $region126: #{gat_link_autoencoder_forward.1} parent=0 // pred_check
    _
  $region127: #{gat_link_autoencoder_forward.1} parent=0 // pred_check_branch
    %2036 = sbr.rel (0) target = $region129
  $region128: #{gat_link_autoencoder_forward.1} parent=0 // pred_region
    _
  $region129: #{gat_link_autoencoder_forward.1} parent=0 // pred_fallthru
    _

</llo_original>
